<compile_context>
chip_gen: v7x
topology: tpu7x:2x2x1
jax: 0.10.0
libtpu: 0.0.40
codegen_flags: <defaults>
</compile_context>

<pallas_src>
import math
import functools

import jax
import jax.numpy as jnp
from jax.experimental import pallas as pl
from jax.experimental.pallas import tpu as pltpu  # noqa: F401  (kept for TPU-specific tuning)


# ------------------------------ fused kernel ---------------------------------

def _fused_rnn_kernel(*refs, num_layers):
    """refs = (x, [w_ih, w_hh, b] * num_layers, w_out, b_out, out).

    x     : (B, T, D)   f32, batch-first (as in the PyTorch module)
    w_ih  : (Din, 4H)   bf16  (PyTorch weight_ih_l{k}.T)
    w_hh  : (H,   4H)   bf16  (PyTorch weight_hh_l{k}.T)
    b     : (1,   4H)   f32   (b_ih + b_hh)
    w_out : (H,   C)    bf16
    b_out : (1,   C)    f32
    out   : (B,   C)    f32
    """
    x_ref = refs[0]
    w_out_ref = refs[1 + 3 * num_layers]
    b_out_ref = refs[2 + 3 * num_layers]
    out_ref = refs[3 + 3 * num_layers]

    B, T, _ = x_ref.shape
    H = refs[2].shape[0]

    # Gather batch-first x into time-major rows (row = t*B + b) with static ref slices
    # (avoids a wrapper-side transpose that would materialize an HBM copy).
    cur = jnp.concatenate([x_ref[:, t, :] for t in range(T)], axis=0)      # (T*B, D)

    h = None
    for layer in range(num_layers):
        w_ih = refs[1 + 3 * layer][...]          # (Din, 4H) bf16
        w_hh = refs[2 + 3 * layer][...]          # (H, 4H)   bf16
        b = refs[3 + 3 * layer][...]             # (1, 4H)   f32

        # Hoisted input projection: one big matmul covering every timestep of this layer.
        pre = jnp.dot(cur.astype(jnp.bfloat16), w_ih,
                      preferred_element_type=jnp.float32) + b              # (T*B, 4H)

        h = jnp.zeros((B, H), jnp.float32)
        c = jnp.zeros((B, H), jnp.float32)
        hs = []
        for t in range(T):                       # fully unrolled sequential recurrence
            gates = pre[t * B:(t + 1) * B, :] + jnp.dot(
                h.astype(jnp.bfloat16), w_hh, preferred_element_type=jnp.float32)
            # Full-tile transcendentals (EUP), then cheap static lane slices.
            sig = jax.nn.sigmoid(gates)
            th = jnp.tanh(gates)
            i_g = sig[:, 0 * H:1 * H]
            f_g = sig[:, 1 * H:2 * H]
            g_g = th[:, 2 * H:3 * H]
            o_g = sig[:, 3 * H:4 * H]
            c = f_g * c + i_g * g_g
            h = o_g * jnp.tanh(c)
            hs.append(h)

        # Time-major (T*B, H) input sequence for the next layer (stays in VMEM/vregs).
        cur = jnp.concatenate(hs, axis=0)

    # Fused output head on the last timestep's hidden state of the top layer.
    logits = jnp.dot(h.astype(jnp.bfloat16), w_out_ref[...],
                     preferred_element_type=jnp.float32) + b_out_ref[...]
    out_ref[...] = logits.astype(out_ref.dtype)

    # TODO(synk): for very long T, switch the unrolled time loop to a chunked grid
    # (TC timesteps per grid step) to bound code size; unnecessary at these shapes.


# ------------------------------ wrapper ---------------------------------------

def _full_spec(shape):
    nd = len(shape)
    return pl.BlockSpec(shape, lambda *_: (0,) * nd)


@jax.jit
def rnn_forward(x, params):
    """x: (B, T, input_size) batch-first, like the PyTorch module. Returns (B, num_classes)."""
    layers = params["lstm"]
    num_layers = len(layers)
    B = x.shape[0]
    C = params["w_out"].shape[1]

    inputs = [x]
    for lp in layers:
        inputs += [lp["w_ih"], lp["w_hh"], lp["b"]]
    inputs += [params["w_out"], params["b_out"]]

    return pl.pallas_call(
        functools.partial(_fused_rnn_kernel, num_layers=num_layers),
        out_shape=jax.ShapeDtypeStruct((B, C), jnp.float32),
        in_specs=[_full_spec(a.shape) for a in inputs],
        out_specs=_full_spec((B, C)),
    )(*inputs)


# ------------------------------ params -----------------------------------------

def init_params(key, input_size, hidden_size, num_layers, num_classes):
    """PyTorch-style uniform(-1/sqrt(H), 1/sqrt(H)) init; weights stored transposed + bf16."""
    stdv = 1.0 / math.sqrt(hidden_size)
    params = {"lstm": []}
    for layer in range(num_layers):
        in_dim = input_size if layer == 0 else hidden_size
        key, k1, k2, k3, k4 = jax.random.split(key, 5)
        w_ih = jax.random.uniform(k1, (in_dim, 4 * hidden_size), jnp.float32, -stdv, stdv)
        w_hh = jax.random.uniform(k2, (hidden_size, 4 * hidden_size), jnp.float32, -stdv, stdv)
        b_ih = jax.random.uniform(k3, (4 * hidden_size,), jnp.float32, -stdv, stdv)
        b_hh = jax.random.uniform(k4, (4 * hidden_size,), jnp.float32, -stdv, stdv)
        params["lstm"].append({
            "w_ih": w_ih.astype(jnp.bfloat16),
            "w_hh": w_hh.astype(jnp.bfloat16),
            "b": (b_ih + b_hh).reshape(1, -1),          # f32
        })
    key, k5, k6 = jax.random.split(key, 3)
    params["w_out"] = jax.random.uniform(
        k5, (hidden_size, num_classes), jnp.float32, -stdv, stdv).astype(jnp.bfloat16)
    params["b_out"] = jax.random.uniform(
        k6, (1, num_classes), jnp.float32, -stdv, stdv)
    return params


# TODO(synk): NALU branch (linear=False) not implemented; module default linear=True.

if __name__ == "__main__":
    B, T = 8, 8
    input_size, hidden_size, num_layers, num_classes = 32, 32, 2, 10

    key = jax.random.PRNGKey(0)
    key, kx = jax.random.split(key)
    x = jax.random.normal(kx, (B, T, input_size), jnp.float32)

    params = init_params(key, input_size, hidden_size, num_layers, num_classes)

    out = rnn_forward(x, params)
    jax.block_until_ready(out)
    assert out.shape == (B, num_classes)
    print("KERNEL_OK")
</pallas_src>

<mosaic_0001>
module attributes {stable_mosaic.version = 11 : i64} {
  func.func @_fused_rnn_kernel(%arg0: memref<8x8x32xf32, #tpu.memory_space<vmem>>, %arg1: memref<32x128xbf16, #tpu.memory_space<vmem>>, %arg2: memref<32x128xbf16, #tpu.memory_space<vmem>>, %arg3: memref<1x128xf32, #tpu.memory_space<vmem>>, %arg4: memref<32x128xbf16, #tpu.memory_space<vmem>>, %arg5: memref<32x128xbf16, #tpu.memory_space<vmem>>, %arg6: memref<1x128xf32, #tpu.memory_space<vmem>>, %arg7: memref<32x10xbf16, #tpu.memory_space<vmem>>, %arg8: memref<1x10xf32, #tpu.memory_space<vmem>>, %arg9: memref<8x10xf32, #tpu.memory_space<vmem>>) attributes {dimension_semantics = [], scalar_prefetch = 0 : i64, scratch_operands = 0 : i64, tpu.core_type = #tpu.core_type<tc>} {
    %c0 = arith.constant 0 : index
    %c0_0 = arith.constant 0 : index
    %c0_1 = arith.constant 0 : index
    %0 = vector.load %arg0[%c0, %c0_0, %c0_1] : memref<8x8x32xf32, #tpu.memory_space<vmem>>, vector<8x1x32xf32>
    %1 = vector.shape_cast %0 : vector<8x1x32xf32> to vector<8x32xf32>
    %c0_2 = arith.constant 0 : index
    %c1 = arith.constant 1 : index
    %c0_3 = arith.constant 0 : index
    %2 = vector.load %arg0[%c0_2, %c1, %c0_3] : memref<8x8x32xf32, #tpu.memory_space<vmem>>, vector<8x1x32xf32>
    %3 = vector.shape_cast %2 : vector<8x1x32xf32> to vector<8x32xf32>
    %c0_4 = arith.constant 0 : index
    %c2 = arith.constant 2 : index
    %c0_5 = arith.constant 0 : index
    %4 = vector.load %arg0[%c0_4, %c2, %c0_5] : memref<8x8x32xf32, #tpu.memory_space<vmem>>, vector<8x1x32xf32>
    %5 = vector.shape_cast %4 : vector<8x1x32xf32> to vector<8x32xf32>
    %c0_6 = arith.constant 0 : index
    %c3 = arith.constant 3 : index
    %c0_7 = arith.constant 0 : index
    %6 = vector.load %arg0[%c0_6, %c3, %c0_7] : memref<8x8x32xf32, #tpu.memory_space<vmem>>, vector<8x1x32xf32>
    %7 = vector.shape_cast %6 : vector<8x1x32xf32> to vector<8x32xf32>
    %c0_8 = arith.constant 0 : index
    %c4 = arith.constant 4 : index
    %c0_9 = arith.constant 0 : index
    %8 = vector.load %arg0[%c0_8, %c4, %c0_9] : memref<8x8x32xf32, #tpu.memory_space<vmem>>, vector<8x1x32xf32>
    %9 = vector.shape_cast %8 : vector<8x1x32xf32> to vector<8x32xf32>
    %c0_10 = arith.constant 0 : index
    %c5 = arith.constant 5 : index
    %c0_11 = arith.constant 0 : index
    %10 = vector.load %arg0[%c0_10, %c5, %c0_11] : memref<8x8x32xf32, #tpu.memory_space<vmem>>, vector<8x1x32xf32>
    %11 = vector.shape_cast %10 : vector<8x1x32xf32> to vector<8x32xf32>
    %c0_12 = arith.constant 0 : index
    %c6 = arith.constant 6 : index
    %c0_13 = arith.constant 0 : index
    %12 = vector.load %arg0[%c0_12, %c6, %c0_13] : memref<8x8x32xf32, #tpu.memory_space<vmem>>, vector<8x1x32xf32>
    %13 = vector.shape_cast %12 : vector<8x1x32xf32> to vector<8x32xf32>
    %c0_14 = arith.constant 0 : index
    %c7 = arith.constant 7 : index
    %c0_15 = arith.constant 0 : index
    %14 = vector.load %arg0[%c0_14, %c7, %c0_15] : memref<8x8x32xf32, #tpu.memory_space<vmem>>, vector<8x1x32xf32>
    %15 = vector.shape_cast %14 : vector<8x1x32xf32> to vector<8x32xf32>
    %16 = tpu.concatenate %1, %3, %5, %7, %9, %11, %13, %15 in 0 : vector<8x32xf32>, vector<8x32xf32>, vector<8x32xf32>, vector<8x32xf32>, vector<8x32xf32>, vector<8x32xf32>, vector<8x32xf32>, vector<8x32xf32> -> vector<64x32xf32>
    %c0_16 = arith.constant 0 : index
    %c0_17 = arith.constant 0 : index
    %17 = vector.load %arg1[%c0_16, %c0_17] : memref<32x128xbf16, #tpu.memory_space<vmem>>, vector<32x128xbf16>
    %c0_18 = arith.constant 0 : index
    %c0_19 = arith.constant 0 : index
    %18 = vector.load %arg2[%c0_18, %c0_19] : memref<32x128xbf16, #tpu.memory_space<vmem>>, vector<32x128xbf16>
    %c0_20 = arith.constant 0 : index
    %c0_21 = arith.constant 0 : index
    %19 = vector.load %arg3[%c0_20, %c0_21] : memref<1x128xf32, #tpu.memory_space<vmem>>, vector<1x128xf32>
    %20 = arith.truncf %16 : vector<64x32xf32> to vector<64x32xbf16>
    %cst = arith.constant dense<0.000000e+00> : vector<64x128xf32>
    %21 = tpu.matmul %20, %17, %cst {dimension_numbers = #tpu.dot_dimension_numbers<[1], [0], [0], [1], [0, 0, 1, 1], [], []>} : vector<64x32xbf16>, vector<32x128xbf16>, vector<64x128xf32> -> vector<64x128xf32>
    %22 = vector.broadcast %19 : vector<1x128xf32> to vector<64x128xf32>
    %23 = arith.addf %21, %22 : vector<64x128xf32>
    %cst_22 = arith.constant 0.000000e+00 : f32
    %24 = vector.broadcast %cst_22 : f32 to vector<8x32xf32>
    %cst_23 = arith.constant 0.000000e+00 : f32
    %25 = vector.broadcast %cst_23 : f32 to vector<8x32xf32>
    %26 = vector.extract_strided_slice %23 {offsets = [0, 0], sizes = [8, 128], strides = [1, 1]} : vector<64x128xf32> to vector<8x128xf32>
    %27 = arith.truncf %24 : vector<8x32xf32> to vector<8x32xbf16>
    %cst_24 = arith.constant dense<0.000000e+00> : vector<8x128xf32>
    %28 = tpu.matmul %27, %18, %cst_24 {dimension_numbers = #tpu.dot_dimension_numbers<[1], [0], [0], [1], [0, 0, 1, 1], [], []>} : vector<8x32xbf16>, vector<32x128xbf16>, vector<8x128xf32> -> vector<8x128xf32>
    %29 = arith.addf %26, %28 : vector<8x128xf32>
    %30 = arith.negf %29 : vector<8x128xf32>
    %31 = math.exp %30 : vector<8x128xf32>
    %cst_25 = arith.constant 1.000000e+00 : f32
    %32 = vector.broadcast %cst_25 : f32 to vector<8x128xf32>
    %33 = arith.addf %32, %31 : vector<8x128xf32>
    %34 = arith.divf %32, %33 : vector<8x128xf32>
    %35 = math.tanh %29 : vector<8x128xf32>
    %36 = vector.extract_strided_slice %34 {offsets = [0, 0], sizes = [8, 32], strides = [1, 1]} : vector<8x128xf32> to vector<8x32xf32>
    %37 = vector.extract_strided_slice %34 {offsets = [0, 32], sizes = [8, 32], strides = [1, 1]} : vector<8x128xf32> to vector<8x32xf32>
    %38 = vector.extract_strided_slice %35 {offsets = [0, 64], sizes = [8, 32], strides = [1, 1]} : vector<8x128xf32> to vector<8x32xf32>
    %39 = vector.extract_strided_slice %34 {offsets = [0, 96], sizes = [8, 32], strides = [1, 1]} : vector<8x128xf32> to vector<8x32xf32>
    %40 = arith.mulf %37, %25 : vector<8x32xf32>
    %41 = arith.mulf %36, %38 : vector<8x32xf32>
    %42 = arith.addf %40, %41 : vector<8x32xf32>
    %43 = math.tanh %42 : vector<8x32xf32>
    %44 = arith.mulf %39, %43 : vector<8x32xf32>
    %45 = vector.extract_strided_slice %23 {offsets = [8, 0], sizes = [8, 128], strides = [1, 1]} : vector<64x128xf32> to vector<8x128xf32>
    %46 = arith.truncf %44 : vector<8x32xf32> to vector<8x32xbf16>
    %cst_26 = arith.constant dense<0.000000e+00> : vector<8x128xf32>
    %47 = tpu.matmul %46, %18, %cst_26 {dimension_numbers = #tpu.dot_dimension_numbers<[1], [0], [0], [1], [0, 0, 1, 1], [], []>} : vector<8x32xbf16>, vector<32x128xbf16>, vector<8x128xf32> -> vector<8x128xf32>
    %48 = arith.addf %45, %47 : vector<8x128xf32>
    %49 = arith.negf %48 : vector<8x128xf32>
    %50 = math.exp %49 : vector<8x128xf32>
    %cst_27 = arith.constant 1.000000e+00 : f32
    %51 = vector.broadcast %cst_27 : f32 to vector<8x128xf32>
    %52 = arith.addf %51, %50 : vector<8x128xf32>
    %53 = arith.divf %51, %52 : vector<8x128xf32>
    %54 = math.tanh %48 : vector<8x128xf32>
    %55 = vector.extract_strided_slice %53 {offsets = [0, 0], sizes = [8, 32], strides = [1, 1]} : vector<8x128xf32> to vector<8x32xf32>
    %56 = vector.extract_strided_slice %53 {offsets = [0, 32], sizes = [8, 32], strides = [1, 1]} : vector<8x128xf32> to vector<8x32xf32>
    %57 = vector.extract_strided_slice %54 {offsets = [0, 64], sizes = [8, 32], strides = [1, 1]} : vector<8x128xf32> to vector<8x32xf32>
    %58 = vector.extract_strided_slice %53 {offsets = [0, 96], sizes = [8, 32], strides = [1, 1]} : vector<8x128xf32> to vector<8x32xf32>
    %59 = arith.mulf %56, %42 : vector<8x32xf32>
    %60 = arith.mulf %55, %57 : vector<8x32xf32>
    %61 = arith.addf %59, %60 : vector<8x32xf32>
    %62 = math.tanh %61 : vector<8x32xf32>
    %63 = arith.mulf %58, %62 : vector<8x32xf32>
    %64 = vector.extract_strided_slice %23 {offsets = [16, 0], sizes = [8, 128], strides = [1, 1]} : vector<64x128xf32> to vector<8x128xf32>
    %65 = arith.truncf %63 : vector<8x32xf32> to vector<8x32xbf16>
    %cst_28 = arith.constant dense<0.000000e+00> : vector<8x128xf32>
    %66 = tpu.matmul %65, %18, %cst_28 {dimension_numbers = #tpu.dot_dimension_numbers<[1], [0], [0], [1], [0, 0, 1, 1], [], []>} : vector<8x32xbf16>, vector<32x128xbf16>, vector<8x128xf32> -> vector<8x128xf32>
    %67 = arith.addf %64, %66 : vector<8x128xf32>
    %68 = arith.negf %67 : vector<8x128xf32>
    %69 = math.exp %68 : vector<8x128xf32>
    %cst_29 = arith.constant 1.000000e+00 : f32
    %70 = vector.broadcast %cst_29 : f32 to vector<8x128xf32>
    %71 = arith.addf %70, %69 : vector<8x128xf32>
    %72 = arith.divf %70, %71 : vector<8x128xf32>
    %73 = math.tanh %67 : vector<8x128xf32>
    %74 = vector.extract_strided_slice %72 {offsets = [0, 0], sizes = [8, 32], strides = [1, 1]} : vector<8x128xf32> to vector<8x32xf32>
    %75 = vector.extract_strided_slice %72 {offsets = [0, 32], sizes = [8, 32], strides = [1, 1]} : vector<8x128xf32> to vector<8x32xf32>
    %76 = vector.extract_strided_slice %73 {offsets = [0, 64], sizes = [8, 32], strides = [1, 1]} : vector<8x128xf32> to vector<8x32xf32>
    %77 = vector.extract_strided_slice %72 {offsets = [0, 96], sizes = [8, 32], strides = [1, 1]} : vector<8x128xf32> to vector<8x32xf32>
    %78 = arith.mulf %75, %61 : vector<8x32xf32>
    %79 = arith.mulf %74, %76 : vector<8x32xf32>
    %80 = arith.addf %78, %79 : vector<8x32xf32>
    %81 = math.tanh %80 : vector<8x32xf32>
    %82 = arith.mulf %77, %81 : vector<8x32xf32>
    %83 = vector.extract_strided_slice %23 {offsets = [24, 0], sizes = [8, 128], strides = [1, 1]} : vector<64x128xf32> to vector<8x128xf32>
    %84 = arith.truncf %82 : vector<8x32xf32> to vector<8x32xbf16>
    %cst_30 = arith.constant dense<0.000000e+00> : vector<8x128xf32>
    %85 = tpu.matmul %84, %18, %cst_30 {dimension_numbers = #tpu.dot_dimension_numbers<[1], [0], [0], [1], [0, 0, 1, 1], [], []>} : vector<8x32xbf16>, vector<32x128xbf16>, vector<8x128xf32> -> vector<8x128xf32>
    %86 = arith.addf %83, %85 : vector<8x128xf32>
    %87 = arith.negf %86 : vector<8x128xf32>
    %88 = math.exp %87 : vector<8x128xf32>
    %cst_31 = arith.constant 1.000000e+00 : f32
    %89 = vector.broadcast %cst_31 : f32 to vector<8x128xf32>
    %90 = arith.addf %89, %88 : vector<8x128xf32>
    %91 = arith.divf %89, %90 : vector<8x128xf32>
    %92 = math.tanh %86 : vector<8x128xf32>
    %93 = vector.extract_strided_slice %91 {offsets = [0, 0], sizes = [8, 32], strides = [1, 1]} : vector<8x128xf32> to vector<8x32xf32>
    %94 = vector.extract_strided_slice %91 {offsets = [0, 32], sizes = [8, 32], strides = [1, 1]} : vector<8x128xf32> to vector<8x32xf32>
    %95 = vector.extract_strided_slice %92 {offsets = [0, 64], sizes = [8, 32], strides = [1, 1]} : vector<8x128xf32> to vector<8x32xf32>
    %96 = vector.extract_strided_slice %91 {offsets = [0, 96], sizes = [8, 32], strides = [1, 1]} : vector<8x128xf32> to vector<8x32xf32>
    %97 = arith.mulf %94, %80 : vector<8x32xf32>
    %98 = arith.mulf %93, %95 : vector<8x32xf32>
    %99 = arith.addf %97, %98 : vector<8x32xf32>
    %100 = math.tanh %99 : vector<8x32xf32>
    %101 = arith.mulf %96, %100 : vector<8x32xf32>
    %102 = vector.extract_strided_slice %23 {offsets = [32, 0], sizes = [8, 128], strides = [1, 1]} : vector<64x128xf32> to vector<8x128xf32>
    %103 = arith.truncf %101 : vector<8x32xf32> to vector<8x32xbf16>
    %cst_32 = arith.constant dense<0.000000e+00> : vector<8x128xf32>
    %104 = tpu.matmul %103, %18, %cst_32 {dimension_numbers = #tpu.dot_dimension_numbers<[1], [0], [0], [1], [0, 0, 1, 1], [], []>} : vector<8x32xbf16>, vector<32x128xbf16>, vector<8x128xf32> -> vector<8x128xf32>
    %105 = arith.addf %102, %104 : vector<8x128xf32>
    %106 = arith.negf %105 : vector<8x128xf32>
    %107 = math.exp %106 : vector<8x128xf32>
    %cst_33 = arith.constant 1.000000e+00 : f32
    %108 = vector.broadcast %cst_33 : f32 to vector<8x128xf32>
    %109 = arith.addf %108, %107 : vector<8x128xf32>
    %110 = arith.divf %108, %109 : vector<8x128xf32>
    %111 = math.tanh %105 : vector<8x128xf32>
    %112 = vector.extract_strided_slice %110 {offsets = [0, 0], sizes = [8, 32], strides = [1, 1]} : vector<8x128xf32> to vector<8x32xf32>
    %113 = vector.extract_strided_slice %110 {offsets = [0, 32], sizes = [8, 32], strides = [1, 1]} : vector<8x128xf32> to vector<8x32xf32>
    %114 = vector.extract_strided_slice %111 {offsets = [0, 64], sizes = [8, 32], strides = [1, 1]} : vector<8x128xf32> to vector<8x32xf32>
    %115 = vector.extract_strided_slice %110 {offsets = [0, 96], sizes = [8, 32], strides = [1, 1]} : vector<8x128xf32> to vector<8x32xf32>
    %116 = arith.mulf %113, %99 : vector<8x32xf32>
    %117 = arith.mulf %112, %114 : vector<8x32xf32>
    %118 = arith.addf %116, %117 : vector<8x32xf32>
    %119 = math.tanh %118 : vector<8x32xf32>
    %120 = arith.mulf %115, %119 : vector<8x32xf32>
    %121 = vector.extract_strided_slice %23 {offsets = [40, 0], sizes = [8, 128], strides = [1, 1]} : vector<64x128xf32> to vector<8x128xf32>
    %122 = arith.truncf %120 : vector<8x32xf32> to vector<8x32xbf16>
    %cst_34 = arith.constant dense<0.000000e+00> : vector<8x128xf32>
    %123 = tpu.matmul %122, %18, %cst_34 {dimension_numbers = #tpu.dot_dimension_numbers<[1], [0], [0], [1], [0, 0, 1, 1], [], []>} : vector<8x32xbf16>, vector<32x128xbf16>, vector<8x128xf32> -> vector<8x128xf32>
    %124 = arith.addf %121, %123 : vector<8x128xf32>
    %125 = arith.negf %124 : vector<8x128xf32>
    %126 = math.exp %125 : vector<8x128xf32>
    %cst_35 = arith.constant 1.000000e+00 : f32
    %127 = vector.broadcast %cst_35 : f32 to vector<8x128xf32>
    %128 = arith.addf %127, %126 : vector<8x128xf32>
    %129 = arith.divf %127, %128 : vector<8x128xf32>
    %130 = math.tanh %124 : vector<8x128xf32>
    %131 = vector.extract_strided_slice %129 {offsets = [0, 0], sizes = [8, 32], strides = [1, 1]} : vector<8x128xf32> to vector<8x32xf32>
    %132 = vector.extract_strided_slice %129 {offsets = [0, 32], sizes = [8, 32], strides = [1, 1]} : vector<8x128xf32> to vector<8x32xf32>
    %133 = vector.extract_strided_slice %130 {offsets = [0, 64], sizes = [8, 32], strides = [1, 1]} : vector<8x128xf32> to vector<8x32xf32>
    %134 = vector.extract_strided_slice %129 {offsets = [0, 96], sizes = [8, 32], strides = [1, 1]} : vector<8x128xf32> to vector<8x32xf32>
    %135 = arith.mulf %132, %118 : vector<8x32xf32>
    %136 = arith.mulf %131, %133 : vector<8x32xf32>
    %137 = arith.addf %135, %136 : vector<8x32xf32>
    %138 = math.tanh %137 : vector<8x32xf32>
    %139 = arith.mulf %134, %138 : vector<8x32xf32>
    %140 = vector.extract_strided_slice %23 {offsets = [48, 0], sizes = [8, 128], strides = [1, 1]} : vector<64x128xf32> to vector<8x128xf32>
    %141 = arith.truncf %139 : vector<8x32xf32> to vector<8x32xbf16>
    %cst_36 = arith.constant dense<0.000000e+00> : vector<8x128xf32>
    %142 = tpu.matmul %141, %18, %cst_36 {dimension_numbers = #tpu.dot_dimension_numbers<[1], [0], [0], [1], [0, 0, 1, 1], [], []>} : vector<8x32xbf16>, vector<32x128xbf16>, vector<8x128xf32> -> vector<8x128xf32>
    %143 = arith.addf %140, %142 : vector<8x128xf32>
    %144 = arith.negf %143 : vector<8x128xf32>
    %145 = math.exp %144 : vector<8x128xf32>
    %cst_37 = arith.constant 1.000000e+00 : f32
    %146 = vector.broadcast %cst_37 : f32 to vector<8x128xf32>
    %147 = arith.addf %146, %145 : vector<8x128xf32>
    %148 = arith.divf %146, %147 : vector<8x128xf32>
    %149 = math.tanh %143 : vector<8x128xf32>
    %150 = vector.extract_strided_slice %148 {offsets = [0, 0], sizes = [8, 32], strides = [1, 1]} : vector<8x128xf32> to vector<8x32xf32>
    %151 = vector.extract_strided_slice %148 {offsets = [0, 32], sizes = [8, 32], strides = [1, 1]} : vector<8x128xf32> to vector<8x32xf32>
    %152 = vector.extract_strided_slice %149 {offsets = [0, 64], sizes = [8, 32], strides = [1, 1]} : vector<8x128xf32> to vector<8x32xf32>
    %153 = vector.extract_strided_slice %148 {offsets = [0, 96], sizes = [8, 32], strides = [1, 1]} : vector<8x128xf32> to vector<8x32xf32>
    %154 = arith.mulf %151, %137 : vector<8x32xf32>
    %155 = arith.mulf %150, %152 : vector<8x32xf32>
    %156 = arith.addf %154, %155 : vector<8x32xf32>
    %157 = math.tanh %156 : vector<8x32xf32>
    %158 = arith.mulf %153, %157 : vector<8x32xf32>
    %159 = vector.extract_strided_slice %23 {offsets = [56, 0], sizes = [8, 128], strides = [1, 1]} : vector<64x128xf32> to vector<8x128xf32>
    %160 = arith.truncf %158 : vector<8x32xf32> to vector<8x32xbf16>
    %cst_38 = arith.constant dense<0.000000e+00> : vector<8x128xf32>
    %161 = tpu.matmul %160, %18, %cst_38 {dimension_numbers = #tpu.dot_dimension_numbers<[1], [0], [0], [1], [0, 0, 1, 1], [], []>} : vector<8x32xbf16>, vector<32x128xbf16>, vector<8x128xf32> -> vector<8x128xf32>
    %162 = arith.addf %159, %161 : vector<8x128xf32>
    %163 = arith.negf %162 : vector<8x128xf32>
    %164 = math.exp %163 : vector<8x128xf32>
    %cst_39 = arith.constant 1.000000e+00 : f32
    %165 = vector.broadcast %cst_39 : f32 to vector<8x128xf32>
    %166 = arith.addf %165, %164 : vector<8x128xf32>
    %167 = arith.divf %165, %166 : vector<8x128xf32>
    %168 = math.tanh %162 : vector<8x128xf32>
    %169 = vector.extract_strided_slice %167 {offsets = [0, 0], sizes = [8, 32], strides = [1, 1]} : vector<8x128xf32> to vector<8x32xf32>
    %170 = vector.extract_strided_slice %167 {offsets = [0, 32], sizes = [8, 32], strides = [1, 1]} : vector<8x128xf32> to vector<8x32xf32>
    %171 = vector.extract_strided_slice %168 {offsets = [0, 64], sizes = [8, 32], strides = [1, 1]} : vector<8x128xf32> to vector<8x32xf32>
    %172 = vector.extract_strided_slice %167 {offsets = [0, 96], sizes = [8, 32], strides = [1, 1]} : vector<8x128xf32> to vector<8x32xf32>
    %173 = arith.mulf %170, %156 : vector<8x32xf32>
    %174 = arith.mulf %169, %171 : vector<8x32xf32>
    %175 = arith.addf %173, %174 : vector<8x32xf32>
    %176 = math.tanh %175 : vector<8x32xf32>
    %177 = arith.mulf %172, %176 : vector<8x32xf32>
    %178 = tpu.concatenate %44, %63, %82, %101, %120, %139, %158, %177 in 0 : vector<8x32xf32>, vector<8x32xf32>, vector<8x32xf32>, vector<8x32xf32>, vector<8x32xf32>, vector<8x32xf32>, vector<8x32xf32>, vector<8x32xf32> -> vector<64x32xf32>
    %c0_40 = arith.constant 0 : index
    %c0_41 = arith.constant 0 : index
    %179 = vector.load %arg4[%c0_40, %c0_41] : memref<32x128xbf16, #tpu.memory_space<vmem>>, vector<32x128xbf16>
    %c0_42 = arith.constant 0 : index
    %c0_43 = arith.constant 0 : index
    %180 = vector.load %arg5[%c0_42, %c0_43] : memref<32x128xbf16, #tpu.memory_space<vmem>>, vector<32x128xbf16>
    %c0_44 = arith.constant 0 : index
    %c0_45 = arith.constant 0 : index
    %181 = vector.load %arg6[%c0_44, %c0_45] : memref<1x128xf32, #tpu.memory_space<vmem>>, vector<1x128xf32>
    %182 = arith.truncf %178 : vector<64x32xf32> to vector<64x32xbf16>
    %cst_46 = arith.constant dense<0.000000e+00> : vector<64x128xf32>
    %183 = tpu.matmul %182, %179, %cst_46 {dimension_numbers = #tpu.dot_dimension_numbers<[1], [0], [0], [1], [0, 0, 1, 1], [], []>} : vector<64x32xbf16>, vector<32x128xbf16>, vector<64x128xf32> -> vector<64x128xf32>
    %184 = vector.broadcast %181 : vector<1x128xf32> to vector<64x128xf32>
    %185 = arith.addf %183, %184 : vector<64x128xf32>
    %cst_47 = arith.constant 0.000000e+00 : f32
    %186 = vector.broadcast %cst_47 : f32 to vector<8x32xf32>
    %cst_48 = arith.constant 0.000000e+00 : f32
    %187 = vector.broadcast %cst_48 : f32 to vector<8x32xf32>
    %188 = vector.extract_strided_slice %185 {offsets = [0, 0], sizes = [8, 128], strides = [1, 1]} : vector<64x128xf32> to vector<8x128xf32>
    %189 = arith.truncf %186 : vector<8x32xf32> to vector<8x32xbf16>
    %cst_49 = arith.constant dense<0.000000e+00> : vector<8x128xf32>
    %190 = tpu.matmul %189, %180, %cst_49 {dimension_numbers = #tpu.dot_dimension_numbers<[1], [0], [0], [1], [0, 0, 1, 1], [], []>} : vector<8x32xbf16>, vector<32x128xbf16>, vector<8x128xf32> -> vector<8x128xf32>
    %191 = arith.addf %188, %190 : vector<8x128xf32>
    %192 = arith.negf %191 : vector<8x128xf32>
    %193 = math.exp %192 : vector<8x128xf32>
    %cst_50 = arith.constant 1.000000e+00 : f32
    %194 = vector.broadcast %cst_50 : f32 to vector<8x128xf32>
    %195 = arith.addf %194, %193 : vector<8x128xf32>
    %196 = arith.divf %194, %195 : vector<8x128xf32>
    %197 = math.tanh %191 : vector<8x128xf32>
    %198 = vector.extract_strided_slice %196 {offsets = [0, 0], sizes = [8, 32], strides = [1, 1]} : vector<8x128xf32> to vector<8x32xf32>
    %199 = vector.extract_strided_slice %196 {offsets = [0, 32], sizes = [8, 32], strides = [1, 1]} : vector<8x128xf32> to vector<8x32xf32>
    %200 = vector.extract_strided_slice %197 {offsets = [0, 64], sizes = [8, 32], strides = [1, 1]} : vector<8x128xf32> to vector<8x32xf32>
    %201 = vector.extract_strided_slice %196 {offsets = [0, 96], sizes = [8, 32], strides = [1, 1]} : vector<8x128xf32> to vector<8x32xf32>
    %202 = arith.mulf %199, %187 : vector<8x32xf32>
    %203 = arith.mulf %198, %200 : vector<8x32xf32>
    %204 = arith.addf %202, %203 : vector<8x32xf32>
    %205 = math.tanh %204 : vector<8x32xf32>
    %206 = arith.mulf %201, %205 : vector<8x32xf32>
    %207 = vector.extract_strided_slice %185 {offsets = [8, 0], sizes = [8, 128], strides = [1, 1]} : vector<64x128xf32> to vector<8x128xf32>
    %208 = arith.truncf %206 : vector<8x32xf32> to vector<8x32xbf16>
    %cst_51 = arith.constant dense<0.000000e+00> : vector<8x128xf32>
    %209 = tpu.matmul %208, %180, %cst_51 {dimension_numbers = #tpu.dot_dimension_numbers<[1], [0], [0], [1], [0, 0, 1, 1], [], []>} : vector<8x32xbf16>, vector<32x128xbf16>, vector<8x128xf32> -> vector<8x128xf32>
    %210 = arith.addf %207, %209 : vector<8x128xf32>
    %211 = arith.negf %210 : vector<8x128xf32>
    %212 = math.exp %211 : vector<8x128xf32>
    %cst_52 = arith.constant 1.000000e+00 : f32
    %213 = vector.broadcast %cst_52 : f32 to vector<8x128xf32>
    %214 = arith.addf %213, %212 : vector<8x128xf32>
    %215 = arith.divf %213, %214 : vector<8x128xf32>
    %216 = math.tanh %210 : vector<8x128xf32>
    %217 = vector.extract_strided_slice %215 {offsets = [0, 0], sizes = [8, 32], strides = [1, 1]} : vector<8x128xf32> to vector<8x32xf32>
    %218 = vector.extract_strided_slice %215 {offsets = [0, 32], sizes = [8, 32], strides = [1, 1]} : vector<8x128xf32> to vector<8x32xf32>
    %219 = vector.extract_strided_slice %216 {offsets = [0, 64], sizes = [8, 32], strides = [1, 1]} : vector<8x128xf32> to vector<8x32xf32>
    %220 = vector.extract_strided_slice %215 {offsets = [0, 96], sizes = [8, 32], strides = [1, 1]} : vector<8x128xf32> to vector<8x32xf32>
    %221 = arith.mulf %218, %204 : vector<8x32xf32>
    %222 = arith.mulf %217, %219 : vector<8x32xf32>
    %223 = arith.addf %221, %222 : vector<8x32xf32>
    %224 = math.tanh %223 : vector<8x32xf32>
    %225 = arith.mulf %220, %224 : vector<8x32xf32>
    %226 = vector.extract_strided_slice %185 {offsets = [16, 0], sizes = [8, 128], strides = [1, 1]} : vector<64x128xf32> to vector<8x128xf32>
    %227 = arith.truncf %225 : vector<8x32xf32> to vector<8x32xbf16>
    %cst_53 = arith.constant dense<0.000000e+00> : vector<8x128xf32>
    %228 = tpu.matmul %227, %180, %cst_53 {dimension_numbers = #tpu.dot_dimension_numbers<[1], [0], [0], [1], [0, 0, 1, 1], [], []>} : vector<8x32xbf16>, vector<32x128xbf16>, vector<8x128xf32> -> vector<8x128xf32>
    %229 = arith.addf %226, %228 : vector<8x128xf32>
    %230 = arith.negf %229 : vector<8x128xf32>
    %231 = math.exp %230 : vector<8x128xf32>
    %cst_54 = arith.constant 1.000000e+00 : f32
    %232 = vector.broadcast %cst_54 : f32 to vector<8x128xf32>
    %233 = arith.addf %232, %231 : vector<8x128xf32>
    %234 = arith.divf %232, %233 : vector<8x128xf32>
    %235 = math.tanh %229 : vector<8x128xf32>
    %236 = vector.extract_strided_slice %234 {offsets = [0, 0], sizes = [8, 32], strides = [1, 1]} : vector<8x128xf32> to vector<8x32xf32>
    %237 = vector.extract_strided_slice %234 {offsets = [0, 32], sizes = [8, 32], strides = [1, 1]} : vector<8x128xf32> to vector<8x32xf32>
    %238 = vector.extract_strided_slice %235 {offsets = [0, 64], sizes = [8, 32], strides = [1, 1]} : vector<8x128xf32> to vector<8x32xf32>
    %239 = vector.extract_strided_slice %234 {offsets = [0, 96], sizes = [8, 32], strides = [1, 1]} : vector<8x128xf32> to vector<8x32xf32>
    %240 = arith.mulf %237, %223 : vector<8x32xf32>
    %241 = arith.mulf %236, %238 : vector<8x32xf32>
    %242 = arith.addf %240, %241 : vector<8x32xf32>
    %243 = math.tanh %242 : vector<8x32xf32>
    %244 = arith.mulf %239, %243 : vector<8x32xf32>
    %245 = vector.extract_strided_slice %185 {offsets = [24, 0], sizes = [8, 128], strides = [1, 1]} : vector<64x128xf32> to vector<8x128xf32>
    %246 = arith.truncf %244 : vector<8x32xf32> to vector<8x32xbf16>
    %cst_55 = arith.constant dense<0.000000e+00> : vector<8x128xf32>
    %247 = tpu.matmul %246, %180, %cst_55 {dimension_numbers = #tpu.dot_dimension_numbers<[1], [0], [0], [1], [0, 0, 1, 1], [], []>} : vector<8x32xbf16>, vector<32x128xbf16>, vector<8x128xf32> -> vector<8x128xf32>
    %248 = arith.addf %245, %247 : vector<8x128xf32>
    %249 = arith.negf %248 : vector<8x128xf32>
    %250 = math.exp %249 : vector<8x128xf32>
    %cst_56 = arith.constant 1.000000e+00 : f32
    %251 = vector.broadcast %cst_56 : f32 to vector<8x128xf32>
    %252 = arith.addf %251, %250 : vector<8x128xf32>
    %253 = arith.divf %251, %252 : vector<8x128xf32>
    %254 = math.tanh %248 : vector<8x128xf32>
    %255 = vector.extract_strided_slice %253 {offsets = [0, 0], sizes = [8, 32], strides = [1, 1]} : vector<8x128xf32> to vector<8x32xf32>
    %256 = vector.extract_strided_slice %253 {offsets = [0, 32], sizes = [8, 32], strides = [1, 1]} : vector<8x128xf32> to vector<8x32xf32>
    %257 = vector.extract_strided_slice %254 {offsets = [0, 64], sizes = [8, 32], strides = [1, 1]} : vector<8x128xf32> to vector<8x32xf32>
    %258 = vector.extract_strided_slice %253 {offsets = [0, 96], sizes = [8, 32], strides = [1, 1]} : vector<8x128xf32> to vector<8x32xf32>
    %259 = arith.mulf %256, %242 : vector<8x32xf32>
    %260 = arith.mulf %255, %257 : vector<8x32xf32>
    %261 = arith.addf %259, %260 : vector<8x32xf32>
    %262 = math.tanh %261 : vector<8x32xf32>
    %263 = arith.mulf %258, %262 : vector<8x32xf32>
    %264 = vector.extract_strided_slice %185 {offsets = [32, 0], sizes = [8, 128], strides = [1, 1]} : vector<64x128xf32> to vector<8x128xf32>
    %265 = arith.truncf %263 : vector<8x32xf32> to vector<8x32xbf16>
    %cst_57 = arith.constant dense<0.000000e+00> : vector<8x128xf32>
    %266 = tpu.matmul %265, %180, %cst_57 {dimension_numbers = #tpu.dot_dimension_numbers<[1], [0], [0], [1], [0, 0, 1, 1], [], []>} : vector<8x32xbf16>, vector<32x128xbf16>, vector<8x128xf32> -> vector<8x128xf32>
    %267 = arith.addf %264, %266 : vector<8x128xf32>
    %268 = arith.negf %267 : vector<8x128xf32>
    %269 = math.exp %268 : vector<8x128xf32>
    %cst_58 = arith.constant 1.000000e+00 : f32
    %270 = vector.broadcast %cst_58 : f32 to vector<8x128xf32>
    %271 = arith.addf %270, %269 : vector<8x128xf32>
    %272 = arith.divf %270, %271 : vector<8x128xf32>
    %273 = math.tanh %267 : vector<8x128xf32>
    %274 = vector.extract_strided_slice %272 {offsets = [0, 0], sizes = [8, 32], strides = [1, 1]} : vector<8x128xf32> to vector<8x32xf32>
    %275 = vector.extract_strided_slice %272 {offsets = [0, 32], sizes = [8, 32], strides = [1, 1]} : vector<8x128xf32> to vector<8x32xf32>
    %276 = vector.extract_strided_slice %273 {offsets = [0, 64], sizes = [8, 32], strides = [1, 1]} : vector<8x128xf32> to vector<8x32xf32>
    %277 = vector.extract_strided_slice %272 {offsets = [0, 96], sizes = [8, 32], strides = [1, 1]} : vector<8x128xf32> to vector<8x32xf32>
    %278 = arith.mulf %275, %261 : vector<8x32xf32>
    %279 = arith.mulf %274, %276 : vector<8x32xf32>
    %280 = arith.addf %278, %279 : vector<8x32xf32>
    %281 = math.tanh %280 : vector<8x32xf32>
    %282 = arith.mulf %277, %281 : vector<8x32xf32>
    %283 = vector.extract_strided_slice %185 {offsets = [40, 0], sizes = [8, 128], strides = [1, 1]} : vector<64x128xf32> to vector<8x128xf32>
    %284 = arith.truncf %282 : vector<8x32xf32> to vector<8x32xbf16>
    %cst_59 = arith.constant dense<0.000000e+00> : vector<8x128xf32>
    %285 = tpu.matmul %284, %180, %cst_59 {dimension_numbers = #tpu.dot_dimension_numbers<[1], [0], [0], [1], [0, 0, 1, 1], [], []>} : vector<8x32xbf16>, vector<32x128xbf16>, vector<8x128xf32> -> vector<8x128xf32>
    %286 = arith.addf %283, %285 : vector<8x128xf32>
    %287 = arith.negf %286 : vector<8x128xf32>
    %288 = math.exp %287 : vector<8x128xf32>
    %cst_60 = arith.constant 1.000000e+00 : f32
    %289 = vector.broadcast %cst_60 : f32 to vector<8x128xf32>
    %290 = arith.addf %289, %288 : vector<8x128xf32>
    %291 = arith.divf %289, %290 : vector<8x128xf32>
    %292 = math.tanh %286 : vector<8x128xf32>
    %293 = vector.extract_strided_slice %291 {offsets = [0, 0], sizes = [8, 32], strides = [1, 1]} : vector<8x128xf32> to vector<8x32xf32>
    %294 = vector.extract_strided_slice %291 {offsets = [0, 32], sizes = [8, 32], strides = [1, 1]} : vector<8x128xf32> to vector<8x32xf32>
    %295 = vector.extract_strided_slice %292 {offsets = [0, 64], sizes = [8, 32], strides = [1, 1]} : vector<8x128xf32> to vector<8x32xf32>
    %296 = vector.extract_strided_slice %291 {offsets = [0, 96], sizes = [8, 32], strides = [1, 1]} : vector<8x128xf32> to vector<8x32xf32>
    %297 = arith.mulf %294, %280 : vector<8x32xf32>
    %298 = arith.mulf %293, %295 : vector<8x32xf32>
    %299 = arith.addf %297, %298 : vector<8x32xf32>
    %300 = math.tanh %299 : vector<8x32xf32>
    %301 = arith.mulf %296, %300 : vector<8x32xf32>
    %302 = vector.extract_strided_slice %185 {offsets = [48, 0], sizes = [8, 128], strides = [1, 1]} : vector<64x128xf32> to vector<8x128xf32>
    %303 = arith.truncf %301 : vector<8x32xf32> to vector<8x32xbf16>
    %cst_61 = arith.constant dense<0.000000e+00> : vector<8x128xf32>
    %304 = tpu.matmul %303, %180, %cst_61 {dimension_numbers = #tpu.dot_dimension_numbers<[1], [0], [0], [1], [0, 0, 1, 1], [], []>} : vector<8x32xbf16>, vector<32x128xbf16>, vector<8x128xf32> -> vector<8x128xf32>
    %305 = arith.addf %302, %304 : vector<8x128xf32>
    %306 = arith.negf %305 : vector<8x128xf32>
    %307 = math.exp %306 : vector<8x128xf32>
    %cst_62 = arith.constant 1.000000e+00 : f32
    %308 = vector.broadcast %cst_62 : f32 to vector<8x128xf32>
    %309 = arith.addf %308, %307 : vector<8x128xf32>
    %310 = arith.divf %308, %309 : vector<8x128xf32>
    %311 = math.tanh %305 : vector<8x128xf32>
    %312 = vector.extract_strided_slice %310 {offsets = [0, 0], sizes = [8, 32], strides = [1, 1]} : vector<8x128xf32> to vector<8x32xf32>
    %313 = vector.extract_strided_slice %310 {offsets = [0, 32], sizes = [8, 32], strides = [1, 1]} : vector<8x128xf32> to vector<8x32xf32>
    %314 = vector.extract_strided_slice %311 {offsets = [0, 64], sizes = [8, 32], strides = [1, 1]} : vector<8x128xf32> to vector<8x32xf32>
    %315 = vector.extract_strided_slice %310 {offsets = [0, 96], sizes = [8, 32], strides = [1, 1]} : vector<8x128xf32> to vector<8x32xf32>
    %316 = arith.mulf %313, %299 : vector<8x32xf32>
    %317 = arith.mulf %312, %314 : vector<8x32xf32>
    %318 = arith.addf %316, %317 : vector<8x32xf32>
    %319 = math.tanh %318 : vector<8x32xf32>
    %320 = arith.mulf %315, %319 : vector<8x32xf32>
    %321 = vector.extract_strided_slice %185 {offsets = [56, 0], sizes = [8, 128], strides = [1, 1]} : vector<64x128xf32> to vector<8x128xf32>
    %322 = arith.truncf %320 : vector<8x32xf32> to vector<8x32xbf16>
    %cst_63 = arith.constant dense<0.000000e+00> : vector<8x128xf32>
    %323 = tpu.matmul %322, %180, %cst_63 {dimension_numbers = #tpu.dot_dimension_numbers<[1], [0], [0], [1], [0, 0, 1, 1], [], []>} : vector<8x32xbf16>, vector<32x128xbf16>, vector<8x128xf32> -> vector<8x128xf32>
    %324 = arith.addf %321, %323 : vector<8x128xf32>
    %325 = arith.negf %324 : vector<8x128xf32>
    %326 = math.exp %325 : vector<8x128xf32>
    %cst_64 = arith.constant 1.000000e+00 : f32
    %327 = vector.broadcast %cst_64 : f32 to vector<8x128xf32>
    %328 = arith.addf %327, %326 : vector<8x128xf32>
    %329 = arith.divf %327, %328 : vector<8x128xf32>
    %330 = math.tanh %324 : vector<8x128xf32>
    %331 = vector.extract_strided_slice %329 {offsets = [0, 0], sizes = [8, 32], strides = [1, 1]} : vector<8x128xf32> to vector<8x32xf32>
    %332 = vector.extract_strided_slice %329 {offsets = [0, 32], sizes = [8, 32], strides = [1, 1]} : vector<8x128xf32> to vector<8x32xf32>
    %333 = vector.extract_strided_slice %330 {offsets = [0, 64], sizes = [8, 32], strides = [1, 1]} : vector<8x128xf32> to vector<8x32xf32>
    %334 = vector.extract_strided_slice %329 {offsets = [0, 96], sizes = [8, 32], strides = [1, 1]} : vector<8x128xf32> to vector<8x32xf32>
    %335 = arith.mulf %332, %318 : vector<8x32xf32>
    %336 = arith.mulf %331, %333 : vector<8x32xf32>
    %337 = arith.addf %335, %336 : vector<8x32xf32>
    %338 = math.tanh %337 : vector<8x32xf32>
    %339 = arith.mulf %334, %338 : vector<8x32xf32>
    %340 = arith.truncf %339 : vector<8x32xf32> to vector<8x32xbf16>
    %c0_65 = arith.constant 0 : index
    %c0_66 = arith.constant 0 : index
    %341 = vector.load %arg7[%c0_65, %c0_66] : memref<32x10xbf16, #tpu.memory_space<vmem>>, vector<32x10xbf16>
    %cst_67 = arith.constant dense<0.000000e+00> : vector<8x10xf32>
    %342 = tpu.matmul %340, %341, %cst_67 {dimension_numbers = #tpu.dot_dimension_numbers<[1], [0], [0], [1], [0, 0, 1, 1], [], []>} : vector<8x32xbf16>, vector<32x10xbf16>, vector<8x10xf32> -> vector<8x10xf32>
    %c0_68 = arith.constant 0 : index
    %c0_69 = arith.constant 0 : index
    %343 = vector.load %arg8[%c0_68, %c0_69] : memref<1x10xf32, #tpu.memory_space<vmem>>, vector<1x10xf32>
    %344 = vector.broadcast %343 : vector<1x10xf32> to vector<8x10xf32>
    %345 = arith.addf %342, %344 : vector<8x10xf32>
    %c0_70 = arith.constant 0 : index
    %c0_71 = arith.constant 0 : index
    %346 = vector.load %arg9[%c0_70, %c0_71] : memref<8x10xf32, #tpu.memory_space<vmem>>, vector<8x10xf32>
    tpu.vector_store %arg9[%c0_70, %c0_71], %345 {strides = array<i32>} : memref<8x10xf32, #tpu.memory_space<vmem>>, vector<8x10xf32>,
    return
  }
}

</mosaic_0001>

<llo_original>
// kernel: rnn_forward.1
$region0: #{rnn_forward.1}
  #allocation0 [shape = 'u32[]', space=smem, size = 0x4, offset = 0x4, fixed_abs, tag = 'smem constant byte address 0x4 - core index']
  #allocation1 [shape = 'u32[144,128]{1,0:T(1,128)}', space=vmem, size = 0x12000, scoped, tag = 'internal scratch']
  %s0 = inlined_call_operand.hbm [shape: f32[8,8,32], index: 0, kind: input, shape index: {}]
  %s1 = inlined_call_operand.vmem [shape: bf16[32,128], index: 1, kind: input, shape index: {}]
  %s2 = inlined_call_operand.vmem [shape: bf16[32,128], index: 2, kind: input, shape index: {}]
  %s3 = inlined_call_operand.vmem [shape: f32[1,128], index: 3, kind: input, shape index: {}]
  %s4 = inlined_call_operand.vmem [shape: bf16[32,128], index: 4, kind: input, shape index: {}]
  %s5 = inlined_call_operand.hbm [shape: bf16[32,128], index: 5, kind: input, shape index: {}]
  %s6 = inlined_call_operand.vmem [shape: f32[1,128], index: 6, kind: input, shape index: {}]
  %s7 = inlined_call_operand.vmem [shape: bf16[32,10], index: 7, kind: input, shape index: {}]
  %s8 = inlined_call_operand.hbm [shape: f32[1,10], index: 8, kind: input, shape index: {}]
  %s9 = inlined_call_operand.hbm [shape: f32[8,10], index: 9, kind: output, shape index: {}]
  %s10 = sld [smem:[#allocation0]]
  $region58: #{rnn_forward.1} parent=0
    _
  %s12 = ssub.s32 1, %s10
  %s13 = scalar_select 0, %s12, %s10
  $region1: #{rnn_forward.1} parent=0
    #allocation2 [shape = 'u8[32768]{0}', space=vmem, size = 0x8000, scoped, tag = 'input window, operand 0, single buffered']
    #allocation3 [shape = 's32[1]{0}', space=sflag, size = 0x4, scoped, tag = 'scoped memory for rnn_forward.1']
    #allocation4 [shape = 's32[1]{0}', space=sflag, size = 0x4, scoped, tag = 'scoped memory for rnn_forward.1']
    #allocation5 [shape = 'u8[8192]{0}', space=vmem, size = 0x2000, scoped, tag = 'input window, operand 5, single buffered']
    #allocation6 [shape = 's32[1]{0}', space=sflag, size = 0x4, scoped, tag = 'scoped memory for rnn_forward.1']
    #allocation7 [shape = 'u8[512]{0}', space=vmem, size = 0x400, scoped, tag = 'input window, operand 8, single buffered']
    #allocation8 [shape = 'u8[4096]{0}', space=vmem, size = 0x1000, scoped, tag = 'output window, operand 0, single buffered']
    %14 = vsyncpa [#allocation3], 0
    %15 = vsyncpa [#allocation6], 0
    %16 = vsyncpa [#allocation4], 0
    // Predicated region
    $region2: #{rnn_forward.1} parent=1 // pred_check
      _
    $region3: #{rnn_forward.1} parent=1 // pred_check_branch
      %18 = sbr.rel (0) target = $region5
    $region4: #{rnn_forward.1} parent=1 // pred_region
      %s20 = ssub.s32 1024, 1024
      %21 = vsyncadd [#allocation3], %s20
      %s22 = sshll.u32 [#allocation2], 4
      %s23 = int_to_ptr.vmem [resolvable:$true] %s22
      %28 = dma.hbm_to_vmem [thread:$0]  %s0, 1024, %s23, [#allocation3], 128, 128, 8
    $region5: #{rnn_forward.1} parent=1 // pred_fallthru
      _
    // Predicated region
    $region6: #{rnn_forward.1} parent=1 // pred_check
      _
    $region7: #{rnn_forward.1} parent=1 // pred_check_branch
      %30 = sbr.rel (0) target = $region9
    $region8: #{rnn_forward.1} parent=1 // pred_region
      _
    $region9: #{rnn_forward.1} parent=1 // pred_fallthru
      _
    // Predicated region
    $region10: #{rnn_forward.1} parent=1 // pred_check
      _
    $region11: #{rnn_forward.1} parent=1 // pred_check_branch
      %32 = sbr.rel (0) target = $region13
    $region12: #{rnn_forward.1} parent=1 // pred_region
      _
    $region13: #{rnn_forward.1} parent=1 // pred_fallthru
      _
    // Predicated region
    $region14: #{rnn_forward.1} parent=1 // pred_check
      _
    $region15: #{rnn_forward.1} parent=1 // pred_check_branch
      %34 = sbr.rel (0) target = $region17
    $region16: #{rnn_forward.1} parent=1 // pred_region
      _
    $region17: #{rnn_forward.1} parent=1 // pred_fallthru
      _
    // Predicated region
    $region18: #{rnn_forward.1} parent=1 // pred_check
      _
    $region19: #{rnn_forward.1} parent=1 // pred_check_branch
      %36 = sbr.rel (0) target = $region21
    $region20: #{rnn_forward.1} parent=1 // pred_region
      _
    $region21: #{rnn_forward.1} parent=1 // pred_fallthru
      _
    // Predicated region
    $region22: #{rnn_forward.1} parent=1 // pred_check
      _
    $region23: #{rnn_forward.1} parent=1 // pred_check_branch
      %38 = sbr.rel (0) target = $region25
    $region24: #{rnn_forward.1} parent=1 // pred_region
      %s40 = ssub.s32 256, 256
      %41 = vsyncadd [#allocation6], %s40
      %s42 = sshll.u32 [#allocation5], 4
      %s43 = int_to_ptr.vmem [resolvable:$true] %s42
      %48 = dma.hbm_to_vmem [thread:$0]  %s5, 256, %s43, [#allocation6], 64, 64, 4
    $region25: #{rnn_forward.1} parent=1 // pred_fallthru
      _
    // Predicated region
    $region26: #{rnn_forward.1} parent=1 // pred_check
      _
    $region27: #{rnn_forward.1} parent=1 // pred_check_branch
      %50 = sbr.rel (0) target = $region29
    $region28: #{rnn_forward.1} parent=1 // pred_region
      _
    $region29: #{rnn_forward.1} parent=1 // pred_fallthru
      _
    // Predicated region
    $region30: #{rnn_forward.1} parent=1 // pred_check
      _
    $region31: #{rnn_forward.1} parent=1 // pred_check_branch
      %52 = sbr.rel (0) target = $region33
    $region32: #{rnn_forward.1} parent=1 // pred_region
      _
    $region33: #{rnn_forward.1} parent=1 // pred_fallthru
      _
    // Predicated region
    $region34: #{rnn_forward.1} parent=1 // pred_check
      _
    $region35: #{rnn_forward.1} parent=1 // pred_check_branch
      %54 = sbr.rel (0) target = $region37
    $region36: #{rnn_forward.1} parent=1 // pred_region
      %s56 = ssub.s32 16, 16
      %57 = vsyncadd [#allocation6], %s56
      %s59 = sshll.u32 [#allocation7], 4
      %s60 = int_to_ptr.vmem [resolvable:$true] %s59
      %62 = dma.hbm_to_vmem [thread:$0]  %s8, 16, %s60, [#allocation6]
    $region37: #{rnn_forward.1} parent=1 // pred_fallthru
      _
    // Predicated region
    $region38: #{rnn_forward.1} parent=1 // pred_check
      _
    $region39: #{rnn_forward.1} parent=1 // pred_check_branch
      %64 = sbr.rel (0) target = $region41
    $region40: #{rnn_forward.1} parent=1 // pred_region
      %65 = dma.done [#allocation3], 1024
    $region41: #{rnn_forward.1} parent=1 // pred_fallthru
      _
    // Predicated region
    $region42: #{rnn_forward.1} parent=1 // pred_check
      _
    $region43: #{rnn_forward.1} parent=1 // pred_check_branch
      %67 = sbr.rel (0) target = $region45
    $region44: #{rnn_forward.1} parent=1 // pred_region
      %68 = dma.done [#allocation6], 256
    $region45: #{rnn_forward.1} parent=1 // pred_fallthru
      _
    // Predicated region
    $region46: #{rnn_forward.1} parent=1 // pred_check
      _
    $region47: #{rnn_forward.1} parent=1 // pred_check_branch
      %70 = sbr.rel (0) target = $region49
    $region48: #{rnn_forward.1} parent=1 // pred_region
      %71 = dma.done [#allocation6], 16
    $region49: #{rnn_forward.1} parent=1 // pred_fallthru
      _
    %v73 = vld [vmem:[#allocation2] sm:$0x1]
    %v74 = vld [vmem:[#allocation2 + $0x8] sm:$0x1]
    %v75 = vld [vmem:[#allocation2 + $0x10] sm:$0x1]
    %v76 = vld [vmem:[#allocation2 + $0x18] sm:$0x1]
    %v77 = vld [vmem:[#allocation2 + $0x20] sm:$0x1]
    %v78 = vld [vmem:[#allocation2 + $0x28] sm:$0x1]
    %v79 = vld [vmem:[#allocation2 + $0x30] sm:$0x1]
    %v80 = vld [vmem:[#allocation2 + $0x38] sm:$0x1]
    %v81 = vld [vmem:[#allocation2 + $0x1] sm:$0x1]
    %v82 = vld [vmem:[#allocation2 + $0x9] sm:$0x1]
    %v83 = vld [vmem:[#allocation2 + $0x11] sm:$0x1]
    %v84 = vld [vmem:[#allocation2 + $0x19] sm:$0x1]
    %v85 = vld [vmem:[#allocation2 + $0x21] sm:$0x1]
    %v86 = vld [vmem:[#allocation2 + $0x29] sm:$0x1]
    %v87 = vld [vmem:[#allocation2 + $0x31] sm:$0x1]
    %v88 = vld [vmem:[#allocation2 + $0x39] sm:$0x1]
    %v89 = vld [vmem:[#allocation2 + $0x2] sm:$0x1]
    %v90 = vld [vmem:[#allocation2 + $0xa] sm:$0x1]
    %v91 = vld [vmem:[#allocation2 + $0x12] sm:$0x1]
    %v92 = vld [vmem:[#allocation2 + $0x1a] sm:$0x1]
    %v93 = vld [vmem:[#allocation2 + $0x22] sm:$0x1]
    %v94 = vld [vmem:[#allocation2 + $0x2a] sm:$0x1]
    %v95 = vld [vmem:[#allocation2 + $0x32] sm:$0x1]
    %v96 = vld [vmem:[#allocation2 + $0x3a] sm:$0x1]
    %v97 = vld [vmem:[#allocation2 + $0x3] sm:$0x1]
    %v98 = vld [vmem:[#allocation2 + $0xb] sm:$0x1]
    %v99 = vld [vmem:[#allocation2 + $0x13] sm:$0x1]
    %v100 = vld [vmem:[#allocation2 + $0x1b] sm:$0x1]
    %v101 = vld [vmem:[#allocation2 + $0x23] sm:$0x1]
    %v102 = vld [vmem:[#allocation2 + $0x2b] sm:$0x1]
    %v103 = vld [vmem:[#allocation2 + $0x33] sm:$0x1]
    %v104 = vld [vmem:[#allocation2 + $0x3b] sm:$0x1]
    %v105 = vld [vmem:[#allocation2 + $0x4] sm:$0x1]
    %v106 = vld [vmem:[#allocation2 + $0xc] sm:$0x1]
    %v107 = vld [vmem:[#allocation2 + $0x14] sm:$0x1]
    %v108 = vld [vmem:[#allocation2 + $0x1c] sm:$0x1]
    %v109 = vld [vmem:[#allocation2 + $0x24] sm:$0x1]
    %v110 = vld [vmem:[#allocation2 + $0x2c] sm:$0x1]
    %v111 = vld [vmem:[#allocation2 + $0x34] sm:$0x1]
    %v112 = vld [vmem:[#allocation2 + $0x3c] sm:$0x1]
    %v113 = vld [vmem:[#allocation2 + $0x5] sm:$0x1]
    %v114 = vld [vmem:[#allocation2 + $0xd] sm:$0x1]
    %v115 = vld [vmem:[#allocation2 + $0x15] sm:$0x1]
    %v116 = vld [vmem:[#allocation2 + $0x1d] sm:$0x1]
    %v117 = vld [vmem:[#allocation2 + $0x25] sm:$0x1]
    %v118 = vld [vmem:[#allocation2 + $0x2d] sm:$0x1]
    %v119 = vld [vmem:[#allocation2 + $0x35] sm:$0x1]
    %v120 = vld [vmem:[#allocation2 + $0x3d] sm:$0x1]
    %v121 = vld [vmem:[#allocation2 + $0x6] sm:$0x1]
    %v122 = vld [vmem:[#allocation2 + $0xe] sm:$0x1]
    %v123 = vld [vmem:[#allocation2 + $0x16] sm:$0x1]
    %v124 = vld [vmem:[#allocation2 + $0x1e] sm:$0x1]
    %v125 = vld [vmem:[#allocation2 + $0x26] sm:$0x1]
    %v126 = vld [vmem:[#allocation2 + $0x2e] sm:$0x1]
    %v127 = vld [vmem:[#allocation2 + $0x36] sm:$0x1]
    %v128 = vld [vmem:[#allocation2 + $0x3e] sm:$0x1]
    %v129 = vld [vmem:[#allocation2 + $0x7] sm:$0x1]
    %v130 = vld [vmem:[#allocation2 + $0xf] sm:$0x1]
    %v131 = vld [vmem:[#allocation2 + $0x17] sm:$0x1]
    %v132 = vld [vmem:[#allocation2 + $0x1f] sm:$0x1]
    %v133 = vld [vmem:[#allocation2 + $0x27] sm:$0x1]
    %v134 = vld [vmem:[#allocation2 + $0x2f] sm:$0x1]
    %v135 = vld [vmem:[#allocation2 + $0x37] sm:$0x1]
    %v136 = vld [vmem:[#allocation2 + $0x3f] sm:$0x1]
    %v145 = vrot.slane %v74, 7
    %vm146 = vcmask 1041409
    %v147 = vsel %vm146, %v145, %v73
    %v148 = vrot.slane %v75, 6
    %vm149 = vcmask 1042434
    %v150 = vsel %vm149, %v148, %v147
    %v151 = vrot.slane %v76, 5
    %vm152 = vcmask 1043459
    %v153 = vsel %vm152, %v151, %v150
    %v154 = vrot.slane %v77, 4
    %vm155 = vcmask 1044484
    %v156 = vsel %vm155, %v154, %v153
    %v157 = vrot.slane %v78, 3
    %vm158 = vcmask 1045509
    %v159 = vsel %vm158, %v157, %v156
    %v160 = vrot.slane %v79, 2
    %vm161 = vcmask 1046534
    %v162 = vsel %vm161, %v160, %v159
    %v163 = vrot.slane %v80, 1
    %vm164 = vcmask 1047559
    %v165 = vsel %vm164, %v163, %v162
    %v175 = vrot.slane %v82, 7
    %v176 = vsel %vm146, %v175, %v81
    %v177 = vrot.slane %v83, 6
    %v178 = vsel %vm149, %v177, %v176
    %v179 = vrot.slane %v84, 5
    %v180 = vsel %vm152, %v179, %v178
    %v181 = vrot.slane %v85, 4
    %v182 = vsel %vm155, %v181, %v180
    %v183 = vrot.slane %v86, 3
    %v184 = vsel %vm158, %v183, %v182
    %v185 = vrot.slane %v87, 2
    %v186 = vsel %vm161, %v185, %v184
    %v187 = vrot.slane %v88, 1
    %v188 = vsel %vm164, %v187, %v186
    %v198 = vrot.slane %v90, 7
    %v199 = vsel %vm146, %v198, %v89
    %v200 = vrot.slane %v91, 6
    %v201 = vsel %vm149, %v200, %v199
    %v202 = vrot.slane %v92, 5
    %v203 = vsel %vm152, %v202, %v201
    %v204 = vrot.slane %v93, 4
    %v205 = vsel %vm155, %v204, %v203
    %v206 = vrot.slane %v94, 3
    %v207 = vsel %vm158, %v206, %v205
    %v208 = vrot.slane %v95, 2
    %v209 = vsel %vm161, %v208, %v207
    %v210 = vrot.slane %v96, 1
    %v211 = vsel %vm164, %v210, %v209
    %v221 = vrot.slane %v98, 7
    %v222 = vsel %vm146, %v221, %v97
    %v223 = vrot.slane %v99, 6
    %v224 = vsel %vm149, %v223, %v222
    %v225 = vrot.slane %v100, 5
    %v226 = vsel %vm152, %v225, %v224
    %v227 = vrot.slane %v101, 4
    %v228 = vsel %vm155, %v227, %v226
    %v229 = vrot.slane %v102, 3
    %v230 = vsel %vm158, %v229, %v228
    %v231 = vrot.slane %v103, 2
    %v232 = vsel %vm161, %v231, %v230
    %v233 = vrot.slane %v104, 1
    %v234 = vsel %vm164, %v233, %v232
    %v244 = vrot.slane %v106, 7
    %v245 = vsel %vm146, %v244, %v105
    %v246 = vrot.slane %v107, 6
    %v247 = vsel %vm149, %v246, %v245
    %v248 = vrot.slane %v108, 5
    %v249 = vsel %vm152, %v248, %v247
    %v250 = vrot.slane %v109, 4
    %v251 = vsel %vm155, %v250, %v249
    %v252 = vrot.slane %v110, 3
    %v253 = vsel %vm158, %v252, %v251
    %v254 = vrot.slane %v111, 2
    %v255 = vsel %vm161, %v254, %v253
    %v256 = vrot.slane %v112, 1
    %v257 = vsel %vm164, %v256, %v255
    %v267 = vrot.slane %v114, 7
    %v268 = vsel %vm146, %v267, %v113
    %v269 = vrot.slane %v115, 6
    %v270 = vsel %vm149, %v269, %v268
    %v271 = vrot.slane %v116, 5
    %v272 = vsel %vm152, %v271, %v270
    %v273 = vrot.slane %v117, 4
    %v274 = vsel %vm155, %v273, %v272
    %v275 = vrot.slane %v118, 3
    %v276 = vsel %vm158, %v275, %v274
    %v277 = vrot.slane %v119, 2
    %v278 = vsel %vm161, %v277, %v276
    %v279 = vrot.slane %v120, 1
    %v280 = vsel %vm164, %v279, %v278
    %v290 = vrot.slane %v122, 7
    %v291 = vsel %vm146, %v290, %v121
    %v292 = vrot.slane %v123, 6
    %v293 = vsel %vm149, %v292, %v291
    %v294 = vrot.slane %v124, 5
    %v295 = vsel %vm152, %v294, %v293
    %v296 = vrot.slane %v125, 4
    %v297 = vsel %vm155, %v296, %v295
    %v298 = vrot.slane %v126, 3
    %v299 = vsel %vm158, %v298, %v297
    %v300 = vrot.slane %v127, 2
    %v301 = vsel %vm161, %v300, %v299
    %v302 = vrot.slane %v128, 1
    %v303 = vsel %vm164, %v302, %v301
    %v313 = vrot.slane %v130, 7
    %v314 = vsel %vm146, %v313, %v129
    %v315 = vrot.slane %v131, 6
    %v316 = vsel %vm149, %v315, %v314
    %v317 = vrot.slane %v132, 5
    %v318 = vsel %vm152, %v317, %v316
    %v319 = vrot.slane %v133, 4
    %v320 = vsel %vm155, %v319, %v318
    %v321 = vrot.slane %v134, 3
    %v322 = vsel %vm158, %v321, %v320
    %v323 = vrot.slane %v135, 2
    %v324 = vsel %vm161, %v323, %v322
    %v325 = vrot.slane %v136, 1
    %v326 = vsel %vm164, %v325, %v324
    %v328 = vld [vmem:[%s1] sm:$0xf]
    %v329 = vld [vmem:[%s1 + $0x4] sm:$0xf]
    %v330 = vld [vmem:[%s1 + $0x8] sm:$0xf]
    %v331 = vld [vmem:[%s1 + $0xc] sm:$0xf]
    %v332 = vld [vmem:[%s2] sm:$0xf]
    %v333 = vld [vmem:[%s2 + $0x4] sm:$0xf]
    %v334 = vld [vmem:[%s2 + $0x8] sm:$0xf]
    %v335 = vld [vmem:[%s2 + $0xc] sm:$0xf]
    %v336 = vld [vmem:[%s3] sm:$0x1]
    %v337 = vpack.c.bf16 %v188, %v165
    %v338 = vpack.c.bf16 %v234, %v211
    %v339 = vpack.c.bf16 %v280, %v257
    %v340 = vpack.c.bf16 %v326, %v303
    %v342 = vlaneseq
    %v343 = vshrl.u32 %v342, 7
    %v344 = vsub.s32 0, %v343
    %v345 = vrot.slane %v336, %v344
    %v351 = vunpack.c.l.b16 %v328
    %v352 = vunpack.c.l.b16 %v329
    %v353 = vunpack.c.l.b16 %v330
    %v354 = vunpack.c.l.b16 %v331
    %v355 = vpack.c.b16 %v352, %v351
    %v356 = vpack.c.b16 %v354, %v353
    %vm359 = vcmask 261120
    %v361 = vsel %vm359, %v337, 0
    %v364 = vsel %vm359, %v338, 0
    %v367 = vsel %vm359, %v339, 0
    %v370 = vsel %vm359, %v340, 0
    %372 = vmatprep.subr.bf16.mxu0 0
    %373 = vmatpush1.bf16.msra.mxu0 %v355
    %374 = vmatprep.subr.bf16.mxu0 0
    %375 = vmatpush1.bf16.msra.mxu0 %v356
    %376 = vmatprep.subr.bf16.mxu0 0
    %377 = vmatpush1.bf16.msra.mxu0 0
    %378 = vmatprep.subr.bf16.mxu0 0
    %379 = vmatpush1.bf16.msra.mxu0 0
    %380 = vmatprep.subr.bf16.mxu0 0
    %381 = vmatpush1.bf16.msra.mxu0 0
    %382 = vmatprep.subr.bf16.mxu0 0
    %383 = vmatpush1.bf16.msra.mxu0 0
    %384 = vmatprep.subr.bf16.mxu0 0
    %385 = vmatpush1.bf16.msra.mxu0 0
    %386 = vmatprep.subr.bf16.mxu0 0
    %387 = vmatpush1.bf16.msra.mxu0 0
    %388 = vmatprep.subr.bf16.mxu0 0
    %389 = vmatpush1.bf16.msra.mxu0 0
    %390 = vmatprep.subr.bf16.mxu0 0
    %391 = vmatpush1.bf16.msra.mxu0 0
    %392 = vmatprep.subr.bf16.mxu0 0
    %393 = vmatpush1.bf16.msra.mxu0 0
    %394 = vmatprep.subr.bf16.mxu0 0
    %395 = vmatpush1.bf16.msra.mxu0 0
    %396 = vmatprep.subr.bf16.mxu0 0
    %397 = vmatpush1.bf16.msra.mxu0 0
    %398 = vmatprep.subr.bf16.mxu0 0
    %399 = vmatpush1.bf16.msra.mxu0 0
    %400 = vmatprep.subr.bf16.mxu0 0
    %401 = vmatpush1.bf16.msra.mxu0 0
    %402 = vmatprep.subr.bf16.mxu0 0
    %403 = vmatpush1.bf16.msra.mxu0 0
    %404 = vmatprep.mubr.bf16.mxu0 0
    %405 = vmatmul.mubr.bf16.gmra.mrb[0].mxu0 %v361
    %v406 = vpop.f32.mrb[0].mxu0
    %v407 = vadd.f32 %v345, %v406
    %v408 = vpop.f32.mrb[0].mxu0
    %v409 = vpop.f32.mrb[0].mxu0
    %v410 = vadd.f32 %v345, %v409
    %v411 = vpop.f32.mrb[0].mxu0
    %412 = vmatprep.mubr.bf16.mxu0 0
    %413 = vmatmul.mubr.bf16.gmra.mrb[0].mxu0 %v364
    %v414 = vpop.f32.mrb[0].mxu0
    %v415 = vadd.f32 %v345, %v414
    %v416 = vpop.f32.mrb[0].mxu0
    %v417 = vpop.f32.mrb[0].mxu0
    %v418 = vadd.f32 %v345, %v417
    %v419 = vpop.f32.mrb[0].mxu0
    %420 = vmatprep.mubr.bf16.mxu0 0
    %421 = vmatmul.mubr.bf16.gmra.mrb[0].mxu0 %v367
    %v422 = vpop.f32.mrb[0].mxu0
    %v423 = vadd.f32 %v345, %v422
    %v424 = vpop.f32.mrb[0].mxu0
    %v425 = vpop.f32.mrb[0].mxu0
    %v426 = vadd.f32 %v345, %v425
    %v427 = vpop.f32.mrb[0].mxu0
    %428 = vmatprep.mubr.bf16.mxu0 0
    %429 = vmatmul.mubr.bf16.gmra.mrb[0].mxu0 %v370
    %v430 = vpop.f32.mrb[0].mxu0
    %v431 = vadd.f32 %v345, %v430
    %v432 = vpop.f32.mrb[0].mxu0
    %v433 = vpop.f32.mrb[0].mxu0
    %v434 = vadd.f32 %v345, %v433
    %v435 = vpop.f32.mrb[0].mxu0
    %436 = vdwg.mxu0
    %v441 = vunpack.c.l.b16 %v332
    %v442 = vunpack.c.l.b16 %v333
    %v443 = vunpack.c.l.b16 %v334
    %v444 = vunpack.c.l.b16 %v335
    %v445 = vpack.c.b16 %v442, %v441
    %v446 = vpack.c.b16 %v444, %v443
    %v450 = vsel %vm359, 0, 0
    %452 = vmatprep.subr.bf16.mxu0 0
    %453 = vmatpush1.bf16.msra.mxu0 %v445
    %454 = vmatprep.subr.bf16.mxu0 0
    %455 = vmatpush1.bf16.msra.mxu0 %v446
    %456 = vmatprep.subr.bf16.mxu0 0
    %457 = vmatpush1.bf16.msra.mxu0 0
    %458 = vmatprep.subr.bf16.mxu0 0
    %459 = vmatpush1.bf16.msra.mxu0 0
    %460 = vmatprep.subr.bf16.mxu0 0
    %461 = vmatpush1.bf16.msra.mxu0 0
    %462 = vmatprep.subr.bf16.mxu0 0
    %463 = vmatpush1.bf16.msra.mxu0 0
    %464 = vmatprep.subr.bf16.mxu0 0
    %465 = vmatpush1.bf16.msra.mxu0 0
    %466 = vmatprep.subr.bf16.mxu0 0
    %467 = vmatpush1.bf16.msra.mxu0 0
    %468 = vmatprep.subr.bf16.mxu0 0
    %469 = vmatpush1.bf16.msra.mxu0 0
    %470 = vmatprep.subr.bf16.mxu0 0
    %471 = vmatpush1.bf16.msra.mxu0 0
    %472 = vmatprep.subr.bf16.mxu0 0
    %473 = vmatpush1.bf16.msra.mxu0 0
    %474 = vmatprep.subr.bf16.mxu0 0
    %475 = vmatpush1.bf16.msra.mxu0 0
    %476 = vmatprep.subr.bf16.mxu0 0
    %477 = vmatpush1.bf16.msra.mxu0 0
    %478 = vmatprep.subr.bf16.mxu0 0
    %479 = vmatpush1.bf16.msra.mxu0 0
    %480 = vmatprep.subr.bf16.mxu0 0
    %481 = vmatpush1.bf16.msra.mxu0 0
    %482 = vmatprep.subr.bf16.mxu0 0
    %483 = vmatpush1.bf16.msra.mxu0 0
    %484 = vmatprep.mubr.bf16.mxu0 0
    %485 = vmatmul.mubr.bf16.gmra.mrb[0].mxu0 %v450
    %v486 = vpop.f32.mrb[0].mxu0
    %v487 = vadd.f32 0.0, %v486
    %v488 = vpop.f32.mrb[0].mxu0
    %v489 = vpop.f32.mrb[0].mxu0
    %v490 = vpop.f32.mrb[0].mxu0
    %491 = vdwg.mxu0
    %v492 = vadd.f32 %v407, %v487
    %v493 = vxor.u32 %v492, 2147483648
    %v494 = vmul.f32 %v493, 1.442695
    %v495 = vpow.pop %v494
    %v496 = vadd.f32 %v495, 1.0
    %v497 = vrcp.pop %v496
    %v498 = vmul.f32 1.0, %v497
    %v499 = vtanh.pop %v492
    %v500 = vmul.f32 %v498, 0.0
    %502 = vrot.lane.b32.xlu0 %v499, 64
    %v503 = vpop.permute.xlu0 %502
    %v505 = vmul.f32 %v498, %v503
    %507 = vrot.lane.b32.xlu0 %v505, 32
    %v508 = vpop.permute.xlu0 %507
    %v510 = vadd.f32 %v500, %v508
    %v511 = vtanh.pop %v510
    %513 = vrot.lane.b32.xlu0 %v511, 64
    %v514 = vpop.permute.xlu0 %513
    %v516 = vmul.f32 %v498, %v514
    %v517 = vpack.c.bf16 %v516, %v516
    %519 = vrot.lane.b32.xlu0 %v517, 32
    %v520 = vpop.permute.xlu0 %519
    %v522 = vsel %vm359, %v520, 0
    %524 = vmatprep.subr.bf16.mxu0 0
    %525 = vmatpush1.bf16.msra.mxu0 %v445
    %526 = vmatprep.subr.bf16.mxu0 0
    %527 = vmatpush1.bf16.msra.mxu0 %v446
    %528 = vmatprep.subr.bf16.mxu0 0
    %529 = vmatpush1.bf16.msra.mxu0 0
    %530 = vmatprep.subr.bf16.mxu0 0
    %531 = vmatpush1.bf16.msra.mxu0 0
    %532 = vmatprep.subr.bf16.mxu0 0
    %533 = vmatpush1.bf16.msra.mxu0 0
    %534 = vmatprep.subr.bf16.mxu0 0
    %535 = vmatpush1.bf16.msra.mxu0 0
    %536 = vmatprep.subr.bf16.mxu0 0
    %537 = vmatpush1.bf16.msra.mxu0 0
    %538 = vmatprep.subr.bf16.mxu0 0
    %539 = vmatpush1.bf16.msra.mxu0 0
    %540 = vmatprep.subr.bf16.mxu0 0
    %541 = vmatpush1.bf16.msra.mxu0 0
    %542 = vmatprep.subr.bf16.mxu0 0
    %543 = vmatpush1.bf16.msra.mxu0 0
    %544 = vmatprep.subr.bf16.mxu0 0
    %545 = vmatpush1.bf16.msra.mxu0 0
    %546 = vmatprep.subr.bf16.mxu0 0
    %547 = vmatpush1.bf16.msra.mxu0 0
    %548 = vmatprep.subr.bf16.mxu0 0
    %549 = vmatpush1.bf16.msra.mxu0 0
    %550 = vmatprep.subr.bf16.mxu0 0
    %551 = vmatpush1.bf16.msra.mxu0 0
    %552 = vmatprep.subr.bf16.mxu0 0
    %553 = vmatpush1.bf16.msra.mxu0 0
    %554 = vmatprep.subr.bf16.mxu0 0
    %555 = vmatpush1.bf16.msra.mxu0 0
    %556 = vmatprep.mubr.bf16.mxu0 0
    %557 = vmatmul.mubr.bf16.gmra.mrb[0].mxu0 %v522
    %v558 = vpop.f32.mrb[0].mxu0
    %v559 = vadd.f32 0.0, %v558
    %v560 = vpop.f32.mrb[0].mxu0
    %v561 = vpop.f32.mrb[0].mxu0
    %v562 = vpop.f32.mrb[0].mxu0
    %563 = vdwg.mxu0
    %v564 = vadd.f32 %v410, %v559
    %v565 = vxor.u32 %v564, 2147483648
    %v566 = vmul.f32 %v565, 1.442695
    %v567 = vpow.pop %v566
    %v568 = vadd.f32 %v567, 1.0
    %v569 = vrcp.pop %v568
    %v570 = vmul.f32 1.0, %v569
    %v571 = vtanh.pop %v564
    %v572 = vmul.f32 %v570, %v510
    %574 = vrot.lane.b32.xlu0 %v571, 64
    %v575 = vpop.permute.xlu0 %574
    %v577 = vmul.f32 %v570, %v575
    %579 = vrot.lane.b32.xlu0 %v577, 32
    %v580 = vpop.permute.xlu0 %579
    %v582 = vadd.f32 %v572, %v580
    %v583 = vtanh.pop %v582
    %585 = vrot.lane.b32.xlu0 %v583, 64
    %v586 = vpop.permute.xlu0 %585
    %v588 = vmul.f32 %v570, %v586
    %v589 = vpack.c.bf16 %v588, %v588
    %591 = vrot.lane.b32.xlu0 %v589, 32
    %v592 = vpop.permute.xlu0 %591
    %v594 = vsel %vm359, %v592, 0
    %596 = vmatprep.subr.bf16.mxu0 0
    %597 = vmatpush1.bf16.msra.mxu0 %v445
    %598 = vmatprep.subr.bf16.mxu0 0
    %599 = vmatpush1.bf16.msra.mxu0 %v446
    %600 = vmatprep.subr.bf16.mxu0 0
    %601 = vmatpush1.bf16.msra.mxu0 0
    %602 = vmatprep.subr.bf16.mxu0 0
    %603 = vmatpush1.bf16.msra.mxu0 0
    %604 = vmatprep.subr.bf16.mxu0 0
    %605 = vmatpush1.bf16.msra.mxu0 0
    %606 = vmatprep.subr.bf16.mxu0 0
    %607 = vmatpush1.bf16.msra.mxu0 0
    %608 = vmatprep.subr.bf16.mxu0 0
    %609 = vmatpush1.bf16.msra.mxu0 0
    %610 = vmatprep.subr.bf16.mxu0 0
    %611 = vmatpush1.bf16.msra.mxu0 0
    %612 = vmatprep.subr.bf16.mxu0 0
    %613 = vmatpush1.bf16.msra.mxu0 0
    %614 = vmatprep.subr.bf16.mxu0 0
    %615 = vmatpush1.bf16.msra.mxu0 0
    %616 = vmatprep.subr.bf16.mxu0 0
    %617 = vmatpush1.bf16.msra.mxu0 0
    %618 = vmatprep.subr.bf16.mxu0 0
    %619 = vmatpush1.bf16.msra.mxu0 0
    %620 = vmatprep.subr.bf16.mxu0 0
    %621 = vmatpush1.bf16.msra.mxu0 0
    %622 = vmatprep.subr.bf16.mxu0 0
    %623 = vmatpush1.bf16.msra.mxu0 0
    %624 = vmatprep.subr.bf16.mxu0 0
    %625 = vmatpush1.bf16.msra.mxu0 0
    %626 = vmatprep.subr.bf16.mxu0 0
    %627 = vmatpush1.bf16.msra.mxu0 0
    %628 = vmatprep.mubr.bf16.mxu0 0
    %629 = vmatmul.mubr.bf16.gmra.mrb[0].mxu0 %v594
    %v630 = vpop.f32.mrb[0].mxu0
    %v631 = vadd.f32 0.0, %v630
    %v632 = vpop.f32.mrb[0].mxu0
    %v633 = vpop.f32.mrb[0].mxu0
    %v634 = vpop.f32.mrb[0].mxu0
    %635 = vdwg.mxu0
    %v636 = vadd.f32 %v415, %v631
    %v637 = vxor.u32 %v636, 2147483648
    %v638 = vmul.f32 %v637, 1.442695
    %v639 = vpow.pop %v638
    %v640 = vadd.f32 %v639, 1.0
    %v641 = vrcp.pop %v640
    %v642 = vmul.f32 1.0, %v641
    %v643 = vtanh.pop %v636
    %v644 = vmul.f32 %v642, %v582
    %646 = vrot.lane.b32.xlu0 %v643, 64
    %v647 = vpop.permute.xlu0 %646
    %v649 = vmul.f32 %v642, %v647
    %651 = vrot.lane.b32.xlu0 %v649, 32
    %v652 = vpop.permute.xlu0 %651
    %v654 = vadd.f32 %v644, %v652
    %v655 = vtanh.pop %v654
    %657 = vrot.lane.b32.xlu0 %v655, 64
    %v658 = vpop.permute.xlu0 %657
    %v660 = vmul.f32 %v642, %v658
    %v661 = vpack.c.bf16 %v660, %v660
    %663 = vrot.lane.b32.xlu0 %v661, 32
    %v664 = vpop.permute.xlu0 %663
    %v666 = vsel %vm359, %v664, 0
    %668 = vmatprep.subr.bf16.mxu0 0
    %669 = vmatpush1.bf16.msra.mxu0 %v445
    %670 = vmatprep.subr.bf16.mxu0 0
    %671 = vmatpush1.bf16.msra.mxu0 %v446
    %672 = vmatprep.subr.bf16.mxu0 0
    %673 = vmatpush1.bf16.msra.mxu0 0
    %674 = vmatprep.subr.bf16.mxu0 0
    %675 = vmatpush1.bf16.msra.mxu0 0
    %676 = vmatprep.subr.bf16.mxu0 0
    %677 = vmatpush1.bf16.msra.mxu0 0
    %678 = vmatprep.subr.bf16.mxu0 0
    %679 = vmatpush1.bf16.msra.mxu0 0
    %680 = vmatprep.subr.bf16.mxu0 0
    %681 = vmatpush1.bf16.msra.mxu0 0
    %682 = vmatprep.subr.bf16.mxu0 0
    %683 = vmatpush1.bf16.msra.mxu0 0
    %684 = vmatprep.subr.bf16.mxu0 0
    %685 = vmatpush1.bf16.msra.mxu0 0
    %686 = vmatprep.subr.bf16.mxu0 0
    %687 = vmatpush1.bf16.msra.mxu0 0
    %688 = vmatprep.subr.bf16.mxu0 0
    %689 = vmatpush1.bf16.msra.mxu0 0
    %690 = vmatprep.subr.bf16.mxu0 0
    %691 = vmatpush1.bf16.msra.mxu0 0
    %692 = vmatprep.subr.bf16.mxu0 0
    %693 = vmatpush1.bf16.msra.mxu0 0
    %694 = vmatprep.subr.bf16.mxu0 0
    %695 = vmatpush1.bf16.msra.mxu0 0
    %696 = vmatprep.subr.bf16.mxu0 0
    %697 = vmatpush1.bf16.msra.mxu0 0
    %698 = vmatprep.subr.bf16.mxu0 0
    %699 = vmatpush1.bf16.msra.mxu0 0
    %700 = vmatprep.mubr.bf16.mxu0 0
    %701 = vmatmul.mubr.bf16.gmra.mrb[0].mxu0 %v666
    %v702 = vpop.f32.mrb[0].mxu0
    %v703 = vadd.f32 0.0, %v702
    %v704 = vpop.f32.mrb[0].mxu0
    %v705 = vpop.f32.mrb[0].mxu0
    %v706 = vpop.f32.mrb[0].mxu0
    %707 = vdwg.mxu0
    %v708 = vadd.f32 %v418, %v703
    %v709 = vxor.u32 %v708, 2147483648
    %v710 = vmul.f32 %v709, 1.442695
    %v711 = vpow.pop %v710
    %v712 = vadd.f32 %v711, 1.0
    %v713 = vrcp.pop %v712
    %v714 = vmul.f32 1.0, %v713
    %v715 = vtanh.pop %v708
    %v716 = vmul.f32 %v714, %v654
    %718 = vrot.lane.b32.xlu0 %v715, 64
    %v719 = vpop.permute.xlu0 %718
    %v721 = vmul.f32 %v714, %v719
    %723 = vrot.lane.b32.xlu0 %v721, 32
    %v724 = vpop.permute.xlu0 %723
    %v726 = vadd.f32 %v716, %v724
    %v727 = vtanh.pop %v726
    %729 = vrot.lane.b32.xlu0 %v727, 64
    %v730 = vpop.permute.xlu0 %729
    %v732 = vmul.f32 %v714, %v730
    %v733 = vpack.c.bf16 %v732, %v732
    %735 = vrot.lane.b32.xlu0 %v733, 32
    %v736 = vpop.permute.xlu0 %735
    %v738 = vsel %vm359, %v736, 0
    %740 = vmatprep.subr.bf16.mxu0 0
    %741 = vmatpush1.bf16.msra.mxu0 %v445
    %742 = vmatprep.subr.bf16.mxu0 0
    %743 = vmatpush1.bf16.msra.mxu0 %v446
    %744 = vmatprep.subr.bf16.mxu0 0
    %745 = vmatpush1.bf16.msra.mxu0 0
    %746 = vmatprep.subr.bf16.mxu0 0
    %747 = vmatpush1.bf16.msra.mxu0 0
    %748 = vmatprep.subr.bf16.mxu0 0
    %749 = vmatpush1.bf16.msra.mxu0 0
    %750 = vmatprep.subr.bf16.mxu0 0
    %751 = vmatpush1.bf16.msra.mxu0 0
    %752 = vmatprep.subr.bf16.mxu0 0
    %753 = vmatpush1.bf16.msra.mxu0 0
    %754 = vmatprep.subr.bf16.mxu0 0
    %755 = vmatpush1.bf16.msra.mxu0 0
    %756 = vmatprep.subr.bf16.mxu0 0
    %757 = vmatpush1.bf16.msra.mxu0 0
    %758 = vmatprep.subr.bf16.mxu0 0
    %759 = vmatpush1.bf16.msra.mxu0 0
    %760 = vmatprep.subr.bf16.mxu0 0
    %761 = vmatpush1.bf16.msra.mxu0 0
    %762 = vmatprep.subr.bf16.mxu0 0
    %763 = vmatpush1.bf16.msra.mxu0 0
    %764 = vmatprep.subr.bf16.mxu0 0
    %765 = vmatpush1.bf16.msra.mxu0 0
    %766 = vmatprep.subr.bf16.mxu0 0
    %767 = vmatpush1.bf16.msra.mxu0 0
    %768 = vmatprep.subr.bf16.mxu0 0
    %769 = vmatpush1.bf16.msra.mxu0 0
    %770 = vmatprep.subr.bf16.mxu0 0
    %771 = vmatpush1.bf16.msra.mxu0 0
    %772 = vmatprep.mubr.bf16.mxu0 0
    %773 = vmatmul.mubr.bf16.gmra.mrb[0].mxu0 %v738
    %v774 = vpop.f32.mrb[0].mxu0
    %v775 = vadd.f32 0.0, %v774
    %v776 = vpop.f32.mrb[0].mxu0
    %v777 = vpop.f32.mrb[0].mxu0
    %v778 = vpop.f32.mrb[0].mxu0
    %779 = vdwg.mxu0
    %v780 = vadd.f32 %v423, %v775
    %v781 = vxor.u32 %v780, 2147483648
    %v782 = vmul.f32 %v781, 1.442695
    %v783 = vpow.pop %v782
    %v784 = vadd.f32 %v783, 1.0
    %v785 = vrcp.pop %v784
    %v786 = vmul.f32 1.0, %v785
    %v787 = vtanh.pop %v780
    %v788 = vmul.f32 %v786, %v726
    %790 = vrot.lane.b32.xlu0 %v787, 64
    %v791 = vpop.permute.xlu0 %790
    %v793 = vmul.f32 %v786, %v791
    %795 = vrot.lane.b32.xlu0 %v793, 32
    %v796 = vpop.permute.xlu0 %795
    %v798 = vadd.f32 %v788, %v796
    %v799 = vtanh.pop %v798
    %801 = vrot.lane.b32.xlu0 %v799, 64
    %v802 = vpop.permute.xlu0 %801
    %v804 = vmul.f32 %v786, %v802
    %v805 = vpack.c.bf16 %v804, %v804
    %807 = vrot.lane.b32.xlu0 %v805, 32
    %v808 = vpop.permute.xlu0 %807
    %v810 = vsel %vm359, %v808, 0
    %812 = vmatprep.subr.bf16.mxu0 0
    %813 = vmatpush1.bf16.msra.mxu0 %v445
    %814 = vmatprep.subr.bf16.mxu0 0
    %815 = vmatpush1.bf16.msra.mxu0 %v446
    %816 = vmatprep.subr.bf16.mxu0 0
    %817 = vmatpush1.bf16.msra.mxu0 0
    %818 = vmatprep.subr.bf16.mxu0 0
    %819 = vmatpush1.bf16.msra.mxu0 0
    %820 = vmatprep.subr.bf16.mxu0 0
    %821 = vmatpush1.bf16.msra.mxu0 0
    %822 = vmatprep.subr.bf16.mxu0 0
    %823 = vmatpush1.bf16.msra.mxu0 0
    %824 = vmatprep.subr.bf16.mxu0 0
    %825 = vmatpush1.bf16.msra.mxu0 0
    %826 = vmatprep.subr.bf16.mxu0 0
    %827 = vmatpush1.bf16.msra.mxu0 0
    %828 = vmatprep.subr.bf16.mxu0 0
    %829 = vmatpush1.bf16.msra.mxu0 0
    %830 = vmatprep.subr.bf16.mxu0 0
    %831 = vmatpush1.bf16.msra.mxu0 0
    %832 = vmatprep.subr.bf16.mxu0 0
    %833 = vmatpush1.bf16.msra.mxu0 0
    %834 = vmatprep.subr.bf16.mxu0 0
    %835 = vmatpush1.bf16.msra.mxu0 0
    %836 = vmatprep.subr.bf16.mxu0 0
    %837 = vmatpush1.bf16.msra.mxu0 0
    %838 = vmatprep.subr.bf16.mxu0 0
    %839 = vmatpush1.bf16.msra.mxu0 0
    %840 = vmatprep.subr.bf16.mxu0 0
    %841 = vmatpush1.bf16.msra.mxu0 0
    %842 = vmatprep.subr.bf16.mxu0 0
    %843 = vmatpush1.bf16.msra.mxu0 0
    %844 = vmatprep.mubr.bf16.mxu0 0
    %845 = vmatmul.mubr.bf16.gmra.mrb[0].mxu0 %v810
    %v846 = vpop.f32.mrb[0].mxu0
    %v847 = vadd.f32 0.0, %v846
    %v848 = vpop.f32.mrb[0].mxu0
    %v849 = vpop.f32.mrb[0].mxu0
    %v850 = vpop.f32.mrb[0].mxu0
    %851 = vdwg.mxu0
    %v852 = vadd.f32 %v426, %v847
    %v853 = vxor.u32 %v852, 2147483648
    %v854 = vmul.f32 %v853, 1.442695
    %v855 = vpow.pop %v854
    %v856 = vadd.f32 %v855, 1.0
    %v857 = vrcp.pop %v856
    %v858 = vmul.f32 1.0, %v857
    %v859 = vtanh.pop %v852
    %v860 = vmul.f32 %v858, %v798
    %862 = vrot.lane.b32.xlu0 %v859, 64
    %v863 = vpop.permute.xlu0 %862
    %v865 = vmul.f32 %v858, %v863
    %867 = vrot.lane.b32.xlu0 %v865, 32
    %v868 = vpop.permute.xlu0 %867
    %v870 = vadd.f32 %v860, %v868
    %v871 = vtanh.pop %v870
    %873 = vrot.lane.b32.xlu0 %v871, 64
    %v874 = vpop.permute.xlu0 %873
    %v876 = vmul.f32 %v858, %v874
    %v877 = vpack.c.bf16 %v876, %v876
    %879 = vrot.lane.b32.xlu0 %v877, 32
    %v880 = vpop.permute.xlu0 %879
    %v882 = vsel %vm359, %v880, 0
    %884 = vmatprep.subr.bf16.mxu0 0
    %885 = vmatpush1.bf16.msra.mxu0 %v445
    %886 = vmatprep.subr.bf16.mxu0 0
    %887 = vmatpush1.bf16.msra.mxu0 %v446
    %888 = vmatprep.subr.bf16.mxu0 0
    %889 = vmatpush1.bf16.msra.mxu0 0
    %890 = vmatprep.subr.bf16.mxu0 0
    %891 = vmatpush1.bf16.msra.mxu0 0
    %892 = vmatprep.subr.bf16.mxu0 0
    %893 = vmatpush1.bf16.msra.mxu0 0
    %894 = vmatprep.subr.bf16.mxu0 0
    %895 = vmatpush1.bf16.msra.mxu0 0
    %896 = vmatprep.subr.bf16.mxu0 0
    %897 = vmatpush1.bf16.msra.mxu0 0
    %898 = vmatprep.subr.bf16.mxu0 0
    %899 = vmatpush1.bf16.msra.mxu0 0
    %900 = vmatprep.subr.bf16.mxu0 0
    %901 = vmatpush1.bf16.msra.mxu0 0
    %902 = vmatprep.subr.bf16.mxu0 0
    %903 = vmatpush1.bf16.msra.mxu0 0
    %904 = vmatprep.subr.bf16.mxu0 0
    %905 = vmatpush1.bf16.msra.mxu0 0
    %906 = vmatprep.subr.bf16.mxu0 0
    %907 = vmatpush1.bf16.msra.mxu0 0
    %908 = vmatprep.subr.bf16.mxu0 0
    %909 = vmatpush1.bf16.msra.mxu0 0
    %910 = vmatprep.subr.bf16.mxu0 0
    %911 = vmatpush1.bf16.msra.mxu0 0
    %912 = vmatprep.subr.bf16.mxu0 0
    %913 = vmatpush1.bf16.msra.mxu0 0
    %914 = vmatprep.subr.bf16.mxu0 0
    %915 = vmatpush1.bf16.msra.mxu0 0
    %916 = vmatprep.mubr.bf16.mxu0 0
    %917 = vmatmul.mubr.bf16.gmra.mrb[0].mxu0 %v882
    %v918 = vpop.f32.mrb[0].mxu0
    %v919 = vadd.f32 0.0, %v918
    %v920 = vpop.f32.mrb[0].mxu0
    %v921 = vpop.f32.mrb[0].mxu0
    %v922 = vpop.f32.mrb[0].mxu0
    %923 = vdwg.mxu0
    %v924 = vadd.f32 %v431, %v919
    %v925 = vxor.u32 %v924, 2147483648
    %v926 = vmul.f32 %v925, 1.442695
    %v927 = vpow.pop %v926
    %v928 = vadd.f32 %v927, 1.0
    %v929 = vrcp.pop %v928
    %v930 = vmul.f32 1.0, %v929
    %v931 = vtanh.pop %v924
    %v932 = vmul.f32 %v930, %v870
    %934 = vrot.lane.b32.xlu0 %v931, 64
    %v935 = vpop.permute.xlu0 %934
    %v937 = vmul.f32 %v930, %v935
    %939 = vrot.lane.b32.xlu0 %v937, 32
    %v940 = vpop.permute.xlu0 %939
    %v942 = vadd.f32 %v932, %v940
    %v943 = vtanh.pop %v942
    %945 = vrot.lane.b32.xlu0 %v943, 64
    %v946 = vpop.permute.xlu0 %945
    %v948 = vmul.f32 %v930, %v946
    %v949 = vpack.c.bf16 %v948, %v948
    %951 = vrot.lane.b32.xlu0 %v949, 32
    %v952 = vpop.permute.xlu0 %951
    %v954 = vsel %vm359, %v952, 0
    %956 = vmatprep.subr.bf16.mxu0 0
    %957 = vmatpush1.bf16.msra.mxu0 %v445
    %958 = vmatprep.subr.bf16.mxu0 0
    %959 = vmatpush1.bf16.msra.mxu0 %v446
    %960 = vmatprep.subr.bf16.mxu0 0
    %961 = vmatpush1.bf16.msra.mxu0 0
    %962 = vmatprep.subr.bf16.mxu0 0
    %963 = vmatpush1.bf16.msra.mxu0 0
    %964 = vmatprep.subr.bf16.mxu0 0
    %965 = vmatpush1.bf16.msra.mxu0 0
    %966 = vmatprep.subr.bf16.mxu0 0
    %967 = vmatpush1.bf16.msra.mxu0 0
    %968 = vmatprep.subr.bf16.mxu0 0
    %969 = vmatpush1.bf16.msra.mxu0 0
    %970 = vmatprep.subr.bf16.mxu0 0
    %971 = vmatpush1.bf16.msra.mxu0 0
    %972 = vmatprep.subr.bf16.mxu0 0
    %973 = vmatpush1.bf16.msra.mxu0 0
    %974 = vmatprep.subr.bf16.mxu0 0
    %975 = vmatpush1.bf16.msra.mxu0 0
    %976 = vmatprep.subr.bf16.mxu0 0
    %977 = vmatpush1.bf16.msra.mxu0 0
    %978 = vmatprep.subr.bf16.mxu0 0
    %979 = vmatpush1.bf16.msra.mxu0 0
    %980 = vmatprep.subr.bf16.mxu0 0
    %981 = vmatpush1.bf16.msra.mxu0 0
    %982 = vmatprep.subr.bf16.mxu0 0
    %983 = vmatpush1.bf16.msra.mxu0 0
    %984 = vmatprep.subr.bf16.mxu0 0
    %985 = vmatpush1.bf16.msra.mxu0 0
    %986 = vmatprep.subr.bf16.mxu0 0
    %987 = vmatpush1.bf16.msra.mxu0 0
    %988 = vmatprep.mubr.bf16.mxu0 0
    %989 = vmatmul.mubr.bf16.gmra.mrb[0].mxu0 %v954
    %v990 = vpop.f32.mrb[0].mxu0
    %v991 = vadd.f32 0.0, %v990
    %v992 = vpop.f32.mrb[0].mxu0
    %v993 = vpop.f32.mrb[0].mxu0
    %v994 = vpop.f32.mrb[0].mxu0
    %995 = vdwg.mxu0
    %v996 = vadd.f32 %v434, %v991
    %v997 = vxor.u32 %v996, 2147483648
    %v998 = vmul.f32 %v997, 1.442695
    %v999 = vpow.pop %v998
    %v1000 = vadd.f32 %v999, 1.0
    %v1001 = vrcp.pop %v1000
    %v1002 = vmul.f32 1.0, %v1001
    %v1003 = vtanh.pop %v996
    %v1004 = vmul.f32 %v1002, %v942
    %1006 = vrot.lane.b32.xlu0 %v1003, 64
    %v1007 = vpop.permute.xlu0 %1006
    %v1009 = vmul.f32 %v1002, %v1007
    %1011 = vrot.lane.b32.xlu0 %v1009, 32
    %v1012 = vpop.permute.xlu0 %1011
    %v1014 = vadd.f32 %v1004, %v1012
    %v1015 = vtanh.pop %v1014
    %1017 = vrot.lane.b32.xlu0 %v1015, 64
    %v1018 = vpop.permute.xlu0 %1017
    %v1020 = vmul.f32 %v1002, %v1018
    %v1021 = vld [vmem:[%s4] sm:$0xf]
    %v1022 = vld [vmem:[%s4 + $0x4] sm:$0xf]
    %v1023 = vld [vmem:[%s4 + $0x8] sm:$0xf]
    %v1024 = vld [vmem:[%s4 + $0xc] sm:$0xf]
    %v1025 = vld [vmem:[#allocation5] sm:$0xf]
    %v1026 = vld [vmem:[#allocation5 + $0x4] sm:$0xf]
    %v1027 = vld [vmem:[#allocation5 + $0x8] sm:$0xf]
    %v1028 = vld [vmem:[#allocation5 + $0xc] sm:$0xf]
    %v1029 = vld [vmem:[%s6] sm:$0x1]
    %v1030 = vpack.c.bf16 %v588, %v516
    %v1031 = vpack.c.bf16 %v732, %v660
    %v1032 = vpack.c.bf16 %v876, %v804
    %v1033 = vpack.c.bf16 %v1020, %v948
    %v1035 = vlaneseq
    %v1036 = vshrl.u32 %v1035, 7
    %v1037 = vsub.s32 0, %v1036
    %v1038 = vrot.slane %v1029, %v1037
    %1044 = vrot.lane.b32.xlu0 %v1030, 32
    %v1045 = vpop.permute.xlu0 %1044
    %1046 = vrot.lane.b32.xlu0 %v1031, 32
    %v1047 = vpop.permute.xlu0 %1046
    %1048 = vrot.lane.b32.xlu0 %v1032, 32
    %v1049 = vpop.permute.xlu0 %1048
    %1050 = vrot.lane.b32.xlu0 %v1033, 32
    %v1051 = vpop.permute.xlu0 %1050
    %v1056 = vunpack.c.l.b16 %v1021
    %v1057 = vunpack.c.l.b16 %v1022
    %v1058 = vunpack.c.l.b16 %v1023
    %v1059 = vunpack.c.l.b16 %v1024
    %v1060 = vpack.c.b16 %v1057, %v1056
    %v1061 = vpack.c.b16 %v1059, %v1058
    %v1065 = vsel %vm359, %v1045, 0
    %v1068 = vsel %vm359, %v1047, 0
    %v1071 = vsel %vm359, %v1049, 0
    %v1074 = vsel %vm359, %v1051, 0
    %1076 = vmatprep.subr.bf16.mxu0 0
    %1077 = vmatpush1.bf16.msra.mxu0 %v1060
    %1078 = vmatprep.subr.bf16.mxu0 0
    %1079 = vmatpush1.bf16.msra.mxu0 %v1061
    %1080 = vmatprep.subr.bf16.mxu0 0
    %1081 = vmatpush1.bf16.msra.mxu0 0
    %1082 = vmatprep.subr.bf16.mxu0 0
    %1083 = vmatpush1.bf16.msra.mxu0 0
    %1084 = vmatprep.subr.bf16.mxu0 0
    %1085 = vmatpush1.bf16.msra.mxu0 0
    %1086 = vmatprep.subr.bf16.mxu0 0
    %1087 = vmatpush1.bf16.msra.mxu0 0
    %1088 = vmatprep.subr.bf16.mxu0 0
    %1089 = vmatpush1.bf16.msra.mxu0 0
    %1090 = vmatprep.subr.bf16.mxu0 0
    %1091 = vmatpush1.bf16.msra.mxu0 0
    %1092 = vmatprep.subr.bf16.mxu0 0
    %1093 = vmatpush1.bf16.msra.mxu0 0
    %1094 = vmatprep.subr.bf16.mxu0 0
    %1095 = vmatpush1.bf16.msra.mxu0 0
    %1096 = vmatprep.subr.bf16.mxu0 0
    %1097 = vmatpush1.bf16.msra.mxu0 0
    %1098 = vmatprep.subr.bf16.mxu0 0
    %1099 = vmatpush1.bf16.msra.mxu0 0
    %1100 = vmatprep.subr.bf16.mxu0 0
    %1101 = vmatpush1.bf16.msra.mxu0 0
    %1102 = vmatprep.subr.bf16.mxu0 0
    %1103 = vmatpush1.bf16.msra.mxu0 0
    %1104 = vmatprep.subr.bf16.mxu0 0
    %1105 = vmatpush1.bf16.msra.mxu0 0
    %1106 = vmatprep.subr.bf16.mxu0 0
    %1107 = vmatpush1.bf16.msra.mxu0 0
    %1108 = vmatprep.mubr.bf16.mxu0 0
    %1109 = vmatmul.mubr.bf16.gmra.mrb[0].mxu0 %v1065
    %v1110 = vpop.f32.mrb[0].mxu0
    %v1111 = vadd.f32 %v1038, %v1110
    %v1112 = vpop.f32.mrb[0].mxu0
    %v1113 = vpop.f32.mrb[0].mxu0
    %v1114 = vadd.f32 %v1038, %v1113
    %v1115 = vpop.f32.mrb[0].mxu0
    %1116 = vmatprep.mubr.bf16.mxu0 0
    %1117 = vmatmul.mubr.bf16.gmra.mrb[0].mxu0 %v1068
    %v1118 = vpop.f32.mrb[0].mxu0
    %v1119 = vadd.f32 %v1038, %v1118
    %v1120 = vpop.f32.mrb[0].mxu0
    %v1121 = vpop.f32.mrb[0].mxu0
    %v1122 = vadd.f32 %v1038, %v1121
    %v1123 = vpop.f32.mrb[0].mxu0
    %1124 = vmatprep.mubr.bf16.mxu0 0
    %1125 = vmatmul.mubr.bf16.gmra.mrb[0].mxu0 %v1071
    %v1126 = vpop.f32.mrb[0].mxu0
    %v1127 = vadd.f32 %v1038, %v1126
    %v1128 = vpop.f32.mrb[0].mxu0
    %v1129 = vpop.f32.mrb[0].mxu0
    %v1130 = vadd.f32 %v1038, %v1129
    %v1131 = vpop.f32.mrb[0].mxu0
    %1132 = vmatprep.mubr.bf16.mxu0 0
    %1133 = vmatmul.mubr.bf16.gmra.mrb[0].mxu0 %v1074
    %v1134 = vpop.f32.mrb[0].mxu0
    %v1135 = vadd.f32 %v1038, %v1134
    %v1136 = vpop.f32.mrb[0].mxu0
    %v1137 = vpop.f32.mrb[0].mxu0
    %v1138 = vadd.f32 %v1038, %v1137
    %v1139 = vpop.f32.mrb[0].mxu0
    %1140 = vdwg.mxu0
    %v1145 = vunpack.c.l.b16 %v1025
    %v1146 = vunpack.c.l.b16 %v1026
    %v1147 = vunpack.c.l.b16 %v1027
    %v1148 = vunpack.c.l.b16 %v1028
    %v1149 = vpack.c.b16 %v1146, %v1145
    %v1150 = vpack.c.b16 %v1148, %v1147
    %1153 = vmatprep.subr.bf16.mxu0 0
    %1154 = vmatpush1.bf16.msra.mxu0 %v1149
    %1155 = vmatprep.subr.bf16.mxu0 0
    %1156 = vmatpush1.bf16.msra.mxu0 %v1150
    %1157 = vmatprep.subr.bf16.mxu0 0
    %1158 = vmatpush1.bf16.msra.mxu0 0
    %1159 = vmatprep.subr.bf16.mxu0 0
    %1160 = vmatpush1.bf16.msra.mxu0 0
    %1161 = vmatprep.subr.bf16.mxu0 0
    %1162 = vmatpush1.bf16.msra.mxu0 0
    %1163 = vmatprep.subr.bf16.mxu0 0
    %1164 = vmatpush1.bf16.msra.mxu0 0
    %1165 = vmatprep.subr.bf16.mxu0 0
    %1166 = vmatpush1.bf16.msra.mxu0 0
    %1167 = vmatprep.subr.bf16.mxu0 0
    %1168 = vmatpush1.bf16.msra.mxu0 0
    %1169 = vmatprep.subr.bf16.mxu0 0
    %1170 = vmatpush1.bf16.msra.mxu0 0
    %1171 = vmatprep.subr.bf16.mxu0 0
    %1172 = vmatpush1.bf16.msra.mxu0 0
    %1173 = vmatprep.subr.bf16.mxu0 0
    %1174 = vmatpush1.bf16.msra.mxu0 0
    %1175 = vmatprep.subr.bf16.mxu0 0
    %1176 = vmatpush1.bf16.msra.mxu0 0
    %1177 = vmatprep.subr.bf16.mxu0 0
    %1178 = vmatpush1.bf16.msra.mxu0 0
    %1179 = vmatprep.subr.bf16.mxu0 0
    %1180 = vmatpush1.bf16.msra.mxu0 0
    %1181 = vmatprep.subr.bf16.mxu0 0
    %1182 = vmatpush1.bf16.msra.mxu0 0
    %1183 = vmatprep.subr.bf16.mxu0 0
    %1184 = vmatpush1.bf16.msra.mxu0 0
    %1185 = vmatprep.mubr.bf16.mxu0 0
    %1186 = vmatmul.mubr.bf16.gmra.mrb[0].mxu0 %v450
    %v1187 = vpop.f32.mrb[0].mxu0
    %v1188 = vadd.f32 0.0, %v1187
    %v1189 = vpop.f32.mrb[0].mxu0
    %v1190 = vpop.f32.mrb[0].mxu0
    %v1191 = vpop.f32.mrb[0].mxu0
    %1192 = vdwg.mxu0
    %v1193 = vadd.f32 %v1111, %v1188
    %v1194 = vxor.u32 %v1193, 2147483648
    %v1195 = vmul.f32 %v1194, 1.442695
    %v1196 = vpow.pop %v1195
    %v1197 = vadd.f32 %v1196, 1.0
    %v1198 = vrcp.pop %v1197
    %v1199 = vmul.f32 1.0, %v1198
    %v1200 = vtanh.pop %v1193
    %v1201 = vmul.f32 %v1199, 0.0
    %1203 = vrot.lane.b32.xlu0 %v1200, 64
    %v1204 = vpop.permute.xlu0 %1203
    %v1206 = vmul.f32 %v1199, %v1204
    %1208 = vrot.lane.b32.xlu0 %v1206, 32
    %v1209 = vpop.permute.xlu0 %1208
    %v1211 = vadd.f32 %v1201, %v1209
    %v1212 = vtanh.pop %v1211
    %1214 = vrot.lane.b32.xlu0 %v1212, 64
    %v1215 = vpop.permute.xlu0 %1214
    %v1217 = vmul.f32 %v1199, %v1215
    %v1218 = vpack.c.bf16 %v1217, %v1217
    %1220 = vrot.lane.b32.xlu0 %v1218, 32
    %v1221 = vpop.permute.xlu0 %1220
    %v1223 = vsel %vm359, %v1221, 0
    %1225 = vmatprep.subr.bf16.mxu0 0
    %1226 = vmatpush1.bf16.msra.mxu0 %v1149
    %1227 = vmatprep.subr.bf16.mxu0 0
    %1228 = vmatpush1.bf16.msra.mxu0 %v1150
    %1229 = vmatprep.subr.bf16.mxu0 0
    %1230 = vmatpush1.bf16.msra.mxu0 0
    %1231 = vmatprep.subr.bf16.mxu0 0
    %1232 = vmatpush1.bf16.msra.mxu0 0
    %1233 = vmatprep.subr.bf16.mxu0 0
    %1234 = vmatpush1.bf16.msra.mxu0 0
    %1235 = vmatprep.subr.bf16.mxu0 0
    %1236 = vmatpush1.bf16.msra.mxu0 0
    %1237 = vmatprep.subr.bf16.mxu0 0
    %1238 = vmatpush1.bf16.msra.mxu0 0
    %1239 = vmatprep.subr.bf16.mxu0 0
    %1240 = vmatpush1.bf16.msra.mxu0 0
    %1241 = vmatprep.subr.bf16.mxu0 0
    %1242 = vmatpush1.bf16.msra.mxu0 0
    %1243 = vmatprep.subr.bf16.mxu0 0
    %1244 = vmatpush1.bf16.msra.mxu0 0
    %1245 = vmatprep.subr.bf16.mxu0 0
    %1246 = vmatpush1.bf16.msra.mxu0 0
    %1247 = vmatprep.subr.bf16.mxu0 0
    %1248 = vmatpush1.bf16.msra.mxu0 0
    %1249 = vmatprep.subr.bf16.mxu0 0
    %1250 = vmatpush1.bf16.msra.mxu0 0
    %1251 = vmatprep.subr.bf16.mxu0 0
    %1252 = vmatpush1.bf16.msra.mxu0 0
    %1253 = vmatprep.subr.bf16.mxu0 0
    %1254 = vmatpush1.bf16.msra.mxu0 0
    %1255 = vmatprep.subr.bf16.mxu0 0
    %1256 = vmatpush1.bf16.msra.mxu0 0
    %1257 = vmatprep.mubr.bf16.mxu0 0
    %1258 = vmatmul.mubr.bf16.gmra.mrb[0].mxu0 %v1223
    %v1259 = vpop.f32.mrb[0].mxu0
    %v1260 = vadd.f32 0.0, %v1259
    %v1261 = vpop.f32.mrb[0].mxu0
    %v1262 = vpop.f32.mrb[0].mxu0
    %v1263 = vpop.f32.mrb[0].mxu0
    %1264 = vdwg.mxu0
    %v1265 = vadd.f32 %v1114, %v1260
    %v1266 = vxor.u32 %v1265, 2147483648
    %v1267 = vmul.f32 %v1266, 1.442695
    %v1268 = vpow.pop %v1267
    %v1269 = vadd.f32 %v1268, 1.0
    %v1270 = vrcp.pop %v1269
    %v1271 = vmul.f32 1.0, %v1270
    %v1272 = vtanh.pop %v1265
    %v1273 = vmul.f32 %v1271, %v1211
    %1275 = vrot.lane.b32.xlu0 %v1272, 64
    %v1276 = vpop.permute.xlu0 %1275
    %v1278 = vmul.f32 %v1271, %v1276
    %1280 = vrot.lane.b32.xlu0 %v1278, 32
    %v1281 = vpop.permute.xlu0 %1280
    %v1283 = vadd.f32 %v1273, %v1281
    %v1284 = vtanh.pop %v1283
    %1286 = vrot.lane.b32.xlu0 %v1284, 64
    %v1287 = vpop.permute.xlu0 %1286
    %v1289 = vmul.f32 %v1271, %v1287
    %v1290 = vpack.c.bf16 %v1289, %v1289
    %1292 = vrot.lane.b32.xlu0 %v1290, 32
    %v1293 = vpop.permute.xlu0 %1292
    %v1295 = vsel %vm359, %v1293, 0
    %1297 = vmatprep.subr.bf16.mxu0 0
    %1298 = vmatpush1.bf16.msra.mxu0 %v1149
    %1299 = vmatprep.subr.bf16.mxu0 0
    %1300 = vmatpush1.bf16.msra.mxu0 %v1150
    %1301 = vmatprep.subr.bf16.mxu0 0
    %1302 = vmatpush1.bf16.msra.mxu0 0
    %1303 = vmatprep.subr.bf16.mxu0 0
    %1304 = vmatpush1.bf16.msra.mxu0 0
    %1305 = vmatprep.subr.bf16.mxu0 0
    %1306 = vmatpush1.bf16.msra.mxu0 0
    %1307 = vmatprep.subr.bf16.mxu0 0
    %1308 = vmatpush1.bf16.msra.mxu0 0
    %1309 = vmatprep.subr.bf16.mxu0 0
    %1310 = vmatpush1.bf16.msra.mxu0 0
    %1311 = vmatprep.subr.bf16.mxu0 0
    %1312 = vmatpush1.bf16.msra.mxu0 0
    %1313 = vmatprep.subr.bf16.mxu0 0
    %1314 = vmatpush1.bf16.msra.mxu0 0
    %1315 = vmatprep.subr.bf16.mxu0 0
    %1316 = vmatpush1.bf16.msra.mxu0 0
    %1317 = vmatprep.subr.bf16.mxu0 0
    %1318 = vmatpush1.bf16.msra.mxu0 0
    %1319 = vmatprep.subr.bf16.mxu0 0
    %1320 = vmatpush1.bf16.msra.mxu0 0
    %1321 = vmatprep.subr.bf16.mxu0 0
    %1322 = vmatpush1.bf16.msra.mxu0 0
    %1323 = vmatprep.subr.bf16.mxu0 0
    %1324 = vmatpush1.bf16.msra.mxu0 0
    %1325 = vmatprep.subr.bf16.mxu0 0
    %1326 = vmatpush1.bf16.msra.mxu0 0
    %1327 = vmatprep.subr.bf16.mxu0 0
    %1328 = vmatpush1.bf16.msra.mxu0 0
    %1329 = vmatprep.mubr.bf16.mxu0 0
    %1330 = vmatmul.mubr.bf16.gmra.mrb[0].mxu0 %v1295
    %v1331 = vpop.f32.mrb[0].mxu0
    %v1332 = vadd.f32 0.0, %v1331
    %v1333 = vpop.f32.mrb[0].mxu0
    %v1334 = vpop.f32.mrb[0].mxu0
    %v1335 = vpop.f32.mrb[0].mxu0
    %1336 = vdwg.mxu0
    %v1337 = vadd.f32 %v1119, %v1332
    %v1338 = vxor.u32 %v1337, 2147483648
    %v1339 = vmul.f32 %v1338, 1.442695
    %v1340 = vpow.pop %v1339
    %v1341 = vadd.f32 %v1340, 1.0
    %v1342 = vrcp.pop %v1341
    %v1343 = vmul.f32 1.0, %v1342
    %v1344 = vtanh.pop %v1337
    %v1345 = vmul.f32 %v1343, %v1283
    %1347 = vrot.lane.b32.xlu0 %v1344, 64
    %v1348 = vpop.permute.xlu0 %1347
    %v1350 = vmul.f32 %v1343, %v1348
    %1352 = vrot.lane.b32.xlu0 %v1350, 32
    %v1353 = vpop.permute.xlu0 %1352
    %v1355 = vadd.f32 %v1345, %v1353
    %v1356 = vtanh.pop %v1355
    %1358 = vrot.lane.b32.xlu0 %v1356, 64
    %v1359 = vpop.permute.xlu0 %1358
    %v1361 = vmul.f32 %v1343, %v1359
    %v1362 = vpack.c.bf16 %v1361, %v1361
    %1364 = vrot.lane.b32.xlu0 %v1362, 32
    %v1365 = vpop.permute.xlu0 %1364
    %v1367 = vsel %vm359, %v1365, 0
    %1369 = vmatprep.subr.bf16.mxu0 0
    %1370 = vmatpush1.bf16.msra.mxu0 %v1149
    %1371 = vmatprep.subr.bf16.mxu0 0
    %1372 = vmatpush1.bf16.msra.mxu0 %v1150
    %1373 = vmatprep.subr.bf16.mxu0 0
    %1374 = vmatpush1.bf16.msra.mxu0 0
    %1375 = vmatprep.subr.bf16.mxu0 0
    %1376 = vmatpush1.bf16.msra.mxu0 0
    %1377 = vmatprep.subr.bf16.mxu0 0
    %1378 = vmatpush1.bf16.msra.mxu0 0
    %1379 = vmatprep.subr.bf16.mxu0 0
    %1380 = vmatpush1.bf16.msra.mxu0 0
    %1381 = vmatprep.subr.bf16.mxu0 0
    %1382 = vmatpush1.bf16.msra.mxu0 0
    %1383 = vmatprep.subr.bf16.mxu0 0
    %1384 = vmatpush1.bf16.msra.mxu0 0
    %1385 = vmatprep.subr.bf16.mxu0 0
    %1386 = vmatpush1.bf16.msra.mxu0 0
    %1387 = vmatprep.subr.bf16.mxu0 0
    %1388 = vmatpush1.bf16.msra.mxu0 0
    %1389 = vmatprep.subr.bf16.mxu0 0
    %1390 = vmatpush1.bf16.msra.mxu0 0
    %1391 = vmatprep.subr.bf16.mxu0 0
    %1392 = vmatpush1.bf16.msra.mxu0 0
    %1393 = vmatprep.subr.bf16.mxu0 0
    %1394 = vmatpush1.bf16.msra.mxu0 0
    %1395 = vmatprep.subr.bf16.mxu0 0
    %1396 = vmatpush1.bf16.msra.mxu0 0
    %1397 = vmatprep.subr.bf16.mxu0 0
    %1398 = vmatpush1.bf16.msra.mxu0 0
    %1399 = vmatprep.subr.bf16.mxu0 0
    %1400 = vmatpush1.bf16.msra.mxu0 0
    %1401 = vmatprep.mubr.bf16.mxu0 0
    %1402 = vmatmul.mubr.bf16.gmra.mrb[0].mxu0 %v1367
    %v1403 = vpop.f32.mrb[0].mxu0
    %v1404 = vadd.f32 0.0, %v1403
    %v1405 = vpop.f32.mrb[0].mxu0
    %v1406 = vpop.f32.mrb[0].mxu0
    %v1407 = vpop.f32.mrb[0].mxu0
    %1408 = vdwg.mxu0
    %v1409 = vadd.f32 %v1122, %v1404
    %v1410 = vxor.u32 %v1409, 2147483648
    %v1411 = vmul.f32 %v1410, 1.442695
    %v1412 = vpow.pop %v1411
    %v1413 = vadd.f32 %v1412, 1.0
    %v1414 = vrcp.pop %v1413
    %v1415 = vmul.f32 1.0, %v1414
    %v1416 = vtanh.pop %v1409
    %v1417 = vmul.f32 %v1415, %v1355
    %1419 = vrot.lane.b32.xlu0 %v1416, 64
    %v1420 = vpop.permute.xlu0 %1419
    %v1422 = vmul.f32 %v1415, %v1420
    %1424 = vrot.lane.b32.xlu0 %v1422, 32
    %v1425 = vpop.permute.xlu0 %1424
    %v1427 = vadd.f32 %v1417, %v1425
    %v1428 = vtanh.pop %v1427
    %1430 = vrot.lane.b32.xlu0 %v1428, 64
    %v1431 = vpop.permute.xlu0 %1430
    %v1433 = vmul.f32 %v1415, %v1431
    %v1434 = vpack.c.bf16 %v1433, %v1433
    %1436 = vrot.lane.b32.xlu0 %v1434, 32
    %v1437 = vpop.permute.xlu0 %1436
    %v1439 = vsel %vm359, %v1437, 0
    %1441 = vmatprep.subr.bf16.mxu0 0
    %1442 = vmatpush1.bf16.msra.mxu0 %v1149
    %1443 = vmatprep.subr.bf16.mxu0 0
    %1444 = vmatpush1.bf16.msra.mxu0 %v1150
    %1445 = vmatprep.subr.bf16.mxu0 0
    %1446 = vmatpush1.bf16.msra.mxu0 0
    %1447 = vmatprep.subr.bf16.mxu0 0
    %1448 = vmatpush1.bf16.msra.mxu0 0
    %1449 = vmatprep.subr.bf16.mxu0 0
    %1450 = vmatpush1.bf16.msra.mxu0 0
    %1451 = vmatprep.subr.bf16.mxu0 0
    %1452 = vmatpush1.bf16.msra.mxu0 0
    %1453 = vmatprep.subr.bf16.mxu0 0
    %1454 = vmatpush1.bf16.msra.mxu0 0
    %1455 = vmatprep.subr.bf16.mxu0 0
    %1456 = vmatpush1.bf16.msra.mxu0 0
    %1457 = vmatprep.subr.bf16.mxu0 0
    %1458 = vmatpush1.bf16.msra.mxu0 0
    %1459 = vmatprep.subr.bf16.mxu0 0
    %1460 = vmatpush1.bf16.msra.mxu0 0
    %1461 = vmatprep.subr.bf16.mxu0 0
    %1462 = vmatpush1.bf16.msra.mxu0 0
    %1463 = vmatprep.subr.bf16.mxu0 0
    %1464 = vmatpush1.bf16.msra.mxu0 0
    %1465 = vmatprep.subr.bf16.mxu0 0
    %1466 = vmatpush1.bf16.msra.mxu0 0
    %1467 = vmatprep.subr.bf16.mxu0 0
    %1468 = vmatpush1.bf16.msra.mxu0 0
    %1469 = vmatprep.subr.bf16.mxu0 0
    %1470 = vmatpush1.bf16.msra.mxu0 0
    %1471 = vmatprep.subr.bf16.mxu0 0
    %1472 = vmatpush1.bf16.msra.mxu0 0
    %1473 = vmatprep.mubr.bf16.mxu0 0
    %1474 = vmatmul.mubr.bf16.gmra.mrb[0].mxu0 %v1439
    %v1475 = vpop.f32.mrb[0].mxu0
    %v1476 = vadd.f32 0.0, %v1475
    %v1477 = vpop.f32.mrb[0].mxu0
    %v1478 = vpop.f32.mrb[0].mxu0
    %v1479 = vpop.f32.mrb[0].mxu0
    %1480 = vdwg.mxu0
    %v1481 = vadd.f32 %v1127, %v1476
    %v1482 = vxor.u32 %v1481, 2147483648
    %v1483 = vmul.f32 %v1482, 1.442695
    %v1484 = vpow.pop %v1483
    %v1485 = vadd.f32 %v1484, 1.0
    %v1486 = vrcp.pop %v1485
    %v1487 = vmul.f32 1.0, %v1486
    %v1488 = vtanh.pop %v1481
    %v1489 = vmul.f32 %v1487, %v1427
    %1491 = vrot.lane.b32.xlu0 %v1488, 64
    %v1492 = vpop.permute.xlu0 %1491
    %v1494 = vmul.f32 %v1487, %v1492
    %1496 = vrot.lane.b32.xlu0 %v1494, 32
    %v1497 = vpop.permute.xlu0 %1496
    %v1499 = vadd.f32 %v1489, %v1497
    %v1500 = vtanh.pop %v1499
    %1502 = vrot.lane.b32.xlu0 %v1500, 64
    %v1503 = vpop.permute.xlu0 %1502
    %v1505 = vmul.f32 %v1487, %v1503
    %v1506 = vpack.c.bf16 %v1505, %v1505
    %1508 = vrot.lane.b32.xlu0 %v1506, 32
    %v1509 = vpop.permute.xlu0 %1508
    %v1511 = vsel %vm359, %v1509, 0
    %1513 = vmatprep.subr.bf16.mxu0 0
    %1514 = vmatpush1.bf16.msra.mxu0 %v1149
    %1515 = vmatprep.subr.bf16.mxu0 0
    %1516 = vmatpush1.bf16.msra.mxu0 %v1150
    %1517 = vmatprep.subr.bf16.mxu0 0
    %1518 = vmatpush1.bf16.msra.mxu0 0
    %1519 = vmatprep.subr.bf16.mxu0 0
    %1520 = vmatpush1.bf16.msra.mxu0 0
    %1521 = vmatprep.subr.bf16.mxu0 0
    %1522 = vmatpush1.bf16.msra.mxu0 0
    %1523 = vmatprep.subr.bf16.mxu0 0
    %1524 = vmatpush1.bf16.msra.mxu0 0
    %1525 = vmatprep.subr.bf16.mxu0 0
    %1526 = vmatpush1.bf16.msra.mxu0 0
    %1527 = vmatprep.subr.bf16.mxu0 0
    %1528 = vmatpush1.bf16.msra.mxu0 0
    %1529 = vmatprep.subr.bf16.mxu0 0
    %1530 = vmatpush1.bf16.msra.mxu0 0
    %1531 = vmatprep.subr.bf16.mxu0 0
    %1532 = vmatpush1.bf16.msra.mxu0 0
    %1533 = vmatprep.subr.bf16.mxu0 0
    %1534 = vmatpush1.bf16.msra.mxu0 0
    %1535 = vmatprep.subr.bf16.mxu0 0
    %1536 = vmatpush1.bf16.msra.mxu0 0
    %1537 = vmatprep.subr.bf16.mxu0 0
    %1538 = vmatpush1.bf16.msra.mxu0 0
    %1539 = vmatprep.subr.bf16.mxu0 0
    %1540 = vmatpush1.bf16.msra.mxu0 0
    %1541 = vmatprep.subr.bf16.mxu0 0
    %1542 = vmatpush1.bf16.msra.mxu0 0
    %1543 = vmatprep.subr.bf16.mxu0 0
    %1544 = vmatpush1.bf16.msra.mxu0 0
    %1545 = vmatprep.mubr.bf16.mxu0 0
    %1546 = vmatmul.mubr.bf16.gmra.mrb[0].mxu0 %v1511
    %v1547 = vpop.f32.mrb[0].mxu0
    %v1548 = vadd.f32 0.0, %v1547
    %v1549 = vpop.f32.mrb[0].mxu0
    %v1550 = vpop.f32.mrb[0].mxu0
    %v1551 = vpop.f32.mrb[0].mxu0
    %1552 = vdwg.mxu0
    %v1553 = vadd.f32 %v1130, %v1548
    %v1554 = vxor.u32 %v1553, 2147483648
    %v1555 = vmul.f32 %v1554, 1.442695
    %v1556 = vpow.pop %v1555
    %v1557 = vadd.f32 %v1556, 1.0
    %v1558 = vrcp.pop %v1557
    %v1559 = vmul.f32 1.0, %v1558
    %v1560 = vtanh.pop %v1553
    %v1561 = vmul.f32 %v1559, %v1499
    %1563 = vrot.lane.b32.xlu0 %v1560, 64
    %v1564 = vpop.permute.xlu0 %1563
    %v1566 = vmul.f32 %v1559, %v1564
    %1568 = vrot.lane.b32.xlu0 %v1566, 32
    %v1569 = vpop.permute.xlu0 %1568
    %v1571 = vadd.f32 %v1561, %v1569
    %v1572 = vtanh.pop %v1571
    %1574 = vrot.lane.b32.xlu0 %v1572, 64
    %v1575 = vpop.permute.xlu0 %1574
    %v1577 = vmul.f32 %v1559, %v1575
    %v1578 = vpack.c.bf16 %v1577, %v1577
    %1580 = vrot.lane.b32.xlu0 %v1578, 32
    %v1581 = vpop.permute.xlu0 %1580
    %v1583 = vsel %vm359, %v1581, 0
    %1585 = vmatprep.subr.bf16.mxu0 0
    %1586 = vmatpush1.bf16.msra.mxu0 %v1149
    %1587 = vmatprep.subr.bf16.mxu0 0
    %1588 = vmatpush1.bf16.msra.mxu0 %v1150
    %1589 = vmatprep.subr.bf16.mxu0 0
    %1590 = vmatpush1.bf16.msra.mxu0 0
    %1591 = vmatprep.subr.bf16.mxu0 0
    %1592 = vmatpush1.bf16.msra.mxu0 0
    %1593 = vmatprep.subr.bf16.mxu0 0
    %1594 = vmatpush1.bf16.msra.mxu0 0
    %1595 = vmatprep.subr.bf16.mxu0 0
    %1596 = vmatpush1.bf16.msra.mxu0 0
    %1597 = vmatprep.subr.bf16.mxu0 0
    %1598 = vmatpush1.bf16.msra.mxu0 0
    %1599 = vmatprep.subr.bf16.mxu0 0
    %1600 = vmatpush1.bf16.msra.mxu0 0
    %1601 = vmatprep.subr.bf16.mxu0 0
    %1602 = vmatpush1.bf16.msra.mxu0 0
    %1603 = vmatprep.subr.bf16.mxu0 0
    %1604 = vmatpush1.bf16.msra.mxu0 0
    %1605 = vmatprep.subr.bf16.mxu0 0
    %1606 = vmatpush1.bf16.msra.mxu0 0
    %1607 = vmatprep.subr.bf16.mxu0 0
    %1608 = vmatpush1.bf16.msra.mxu0 0
    %1609 = vmatprep.subr.bf16.mxu0 0
    %1610 = vmatpush1.bf16.msra.mxu0 0
    %1611 = vmatprep.subr.bf16.mxu0 0
    %1612 = vmatpush1.bf16.msra.mxu0 0
    %1613 = vmatprep.subr.bf16.mxu0 0
    %1614 = vmatpush1.bf16.msra.mxu0 0
    %1615 = vmatprep.subr.bf16.mxu0 0
    %1616 = vmatpush1.bf16.msra.mxu0 0
    %1617 = vmatprep.mubr.bf16.mxu0 0
    %1618 = vmatmul.mubr.bf16.gmra.mrb[0].mxu0 %v1583
    %v1619 = vpop.f32.mrb[0].mxu0
    %v1620 = vadd.f32 0.0, %v1619
    %v1621 = vpop.f32.mrb[0].mxu0
    %v1622 = vpop.f32.mrb[0].mxu0
    %v1623 = vpop.f32.mrb[0].mxu0
    %1624 = vdwg.mxu0
    %v1625 = vadd.f32 %v1135, %v1620
    %v1626 = vxor.u32 %v1625, 2147483648
    %v1627 = vmul.f32 %v1626, 1.442695
    %v1628 = vpow.pop %v1627
    %v1629 = vadd.f32 %v1628, 1.0
    %v1630 = vrcp.pop %v1629
    %v1631 = vmul.f32 1.0, %v1630
    %v1632 = vtanh.pop %v1625
    %v1633 = vmul.f32 %v1631, %v1571
    %1635 = vrot.lane.b32.xlu0 %v1632, 64
    %v1636 = vpop.permute.xlu0 %1635
    %v1638 = vmul.f32 %v1631, %v1636
    %1640 = vrot.lane.b32.xlu0 %v1638, 32
    %v1641 = vpop.permute.xlu0 %1640
    %v1643 = vadd.f32 %v1633, %v1641
    %v1644 = vtanh.pop %v1643
    %1646 = vrot.lane.b32.xlu0 %v1644, 64
    %v1647 = vpop.permute.xlu0 %1646
    %v1649 = vmul.f32 %v1631, %v1647
    %v1650 = vpack.c.bf16 %v1649, %v1649
    %1652 = vrot.lane.b32.xlu0 %v1650, 32
    %v1653 = vpop.permute.xlu0 %1652
    %v1655 = vsel %vm359, %v1653, 0
    %1657 = vmatprep.subr.bf16.mxu0 0
    %1658 = vmatpush1.bf16.msra.mxu0 %v1149
    %1659 = vmatprep.subr.bf16.mxu0 0
    %1660 = vmatpush1.bf16.msra.mxu0 %v1150
    %1661 = vmatprep.subr.bf16.mxu0 0
    %1662 = vmatpush1.bf16.msra.mxu0 0
    %1663 = vmatprep.subr.bf16.mxu0 0
    %1664 = vmatpush1.bf16.msra.mxu0 0
    %1665 = vmatprep.subr.bf16.mxu0 0
    %1666 = vmatpush1.bf16.msra.mxu0 0
    %1667 = vmatprep.subr.bf16.mxu0 0
    %1668 = vmatpush1.bf16.msra.mxu0 0
    %1669 = vmatprep.subr.bf16.mxu0 0
    %1670 = vmatpush1.bf16.msra.mxu0 0
    %1671 = vmatprep.subr.bf16.mxu0 0
    %1672 = vmatpush1.bf16.msra.mxu0 0
    %1673 = vmatprep.subr.bf16.mxu0 0
    %1674 = vmatpush1.bf16.msra.mxu0 0
    %1675 = vmatprep.subr.bf16.mxu0 0
    %1676 = vmatpush1.bf16.msra.mxu0 0
    %1677 = vmatprep.subr.bf16.mxu0 0
    %1678 = vmatpush1.bf16.msra.mxu0 0
    %1679 = vmatprep.subr.bf16.mxu0 0
    %1680 = vmatpush1.bf16.msra.mxu0 0
    %1681 = vmatprep.subr.bf16.mxu0 0
    %1682 = vmatpush1.bf16.msra.mxu0 0
    %1683 = vmatprep.subr.bf16.mxu0 0
    %1684 = vmatpush1.bf16.msra.mxu0 0
    %1685 = vmatprep.subr.bf16.mxu0 0
    %1686 = vmatpush1.bf16.msra.mxu0 0
    %1687 = vmatprep.subr.bf16.mxu0 0
    %1688 = vmatpush1.bf16.msra.mxu0 0
    %1689 = vmatprep.mubr.bf16.mxu0 0
    %1690 = vmatmul.mubr.bf16.gmra.mrb[0].mxu0 %v1655
    %v1691 = vpop.f32.mrb[0].mxu0
    %v1692 = vadd.f32 0.0, %v1691
    %v1693 = vpop.f32.mrb[0].mxu0
    %v1694 = vpop.f32.mrb[0].mxu0
    %v1695 = vpop.f32.mrb[0].mxu0
    %1696 = vdwg.mxu0
    %v1697 = vadd.f32 %v1138, %v1692
    %v1698 = vxor.u32 %v1697, 2147483648
    %v1699 = vmul.f32 %v1698, 1.442695
    %v1700 = vpow.pop %v1699
    %v1701 = vadd.f32 %v1700, 1.0
    %v1702 = vrcp.pop %v1701
    %v1703 = vmul.f32 1.0, %v1702
    %v1704 = vtanh.pop %v1697
    %v1705 = vmul.f32 %v1703, %v1643
    %1707 = vrot.lane.b32.xlu0 %v1704, 64
    %v1708 = vpop.permute.xlu0 %1707
    %v1710 = vmul.f32 %v1703, %v1708
    %1712 = vrot.lane.b32.xlu0 %v1710, 32
    %v1713 = vpop.permute.xlu0 %1712
    %v1715 = vadd.f32 %v1705, %v1713
    %v1716 = vtanh.pop %v1715
    %1718 = vrot.lane.b32.xlu0 %v1716, 64
    %v1719 = vpop.permute.xlu0 %1718
    %v1721 = vmul.f32 %v1703, %v1719
    %v1722 = vpack.c.bf16 %v1721, %v1721
    %v1723 = vld [vmem:[%s7] sm:$0xf]
    %v1724 = vld [vmem:[%s7 + $0x4] sm:$0xf]
    %v1725 = vld [vmem:[%s7 + $0x8] sm:$0xf]
    %v1726 = vld [vmem:[%s7 + $0xc] sm:$0xf]
    %v1727 = vld [vmem:[#allocation7] sm:$0x1]
    %v1729 = vlaneseq
    %v1730 = vshrl.u32 %v1729, 7
    %v1731 = vsub.s32 0, %v1730
    %v1732 = vrot.slane %v1727, %v1731
    %1735 = vrot.lane.b32.xlu0 %v1722, 32
    %v1736 = vpop.permute.xlu0 %1735
    %v1741 = vunpack.c.l.b16 %v1723
    %v1742 = vunpack.c.l.b16 %v1724
    %v1743 = vunpack.c.l.b16 %v1725
    %v1744 = vunpack.c.l.b16 %v1726
    %v1745 = vpack.c.b16 %v1742, %v1741
    %v1746 = vpack.c.b16 %v1744, %v1743
    %v1750 = vsel %vm359, %v1736, 0
    %1752 = vmatprep.subr.bf16.mxu0 0
    %1753 = vmatpush1.bf16.msra.mxu0 %v1745
    %1754 = vmatprep.subr.bf16.mxu0 0
    %1755 = vmatpush1.bf16.msra.mxu0 %v1746
    %1756 = vmatprep.subr.bf16.mxu0 0
    %1757 = vmatpush1.bf16.msra.mxu0 0
    %1758 = vmatprep.subr.bf16.mxu0 0
    %1759 = vmatpush1.bf16.msra.mxu0 0
    %1760 = vmatprep.subr.bf16.mxu0 0
    %1761 = vmatpush1.bf16.msra.mxu0 0
    %1762 = vmatprep.subr.bf16.mxu0 0
    %1763 = vmatpush1.bf16.msra.mxu0 0
    %1764 = vmatprep.subr.bf16.mxu0 0
    %1765 = vmatpush1.bf16.msra.mxu0 0
    %1766 = vmatprep.subr.bf16.mxu0 0
    %1767 = vmatpush1.bf16.msra.mxu0 0
    %1768 = vmatprep.subr.bf16.mxu0 0
    %1769 = vmatpush1.bf16.msra.mxu0 0
    %1770 = vmatprep.subr.bf16.mxu0 0
    %1771 = vmatpush1.bf16.msra.mxu0 0
    %1772 = vmatprep.subr.bf16.mxu0 0
    %1773 = vmatpush1.bf16.msra.mxu0 0
    %1774 = vmatprep.subr.bf16.mxu0 0
    %1775 = vmatpush1.bf16.msra.mxu0 0
    %1776 = vmatprep.subr.bf16.mxu0 0
    %1777 = vmatpush1.bf16.msra.mxu0 0
    %1778 = vmatprep.subr.bf16.mxu0 0
    %1779 = vmatpush1.bf16.msra.mxu0 0
    %1780 = vmatprep.subr.bf16.mxu0 0
    %1781 = vmatpush1.bf16.msra.mxu0 0
    %1782 = vmatprep.subr.bf16.mxu0 0
    %1783 = vmatpush1.bf16.msra.mxu0 0
    %1784 = vmatprep.mubr.bf16.mxu0 0
    %1785 = vmatmul.mubr.bf16.gmra.mrb[0].mxu0 %v1750
    %v1786 = vpop.f32.mrb[0].mxu0
    %v1787 = vadd.f32 %v1732, %v1786
    %v1788 = vpop.f32.mrb[0].mxu0
    %v1789 = vpop.f32.mrb[0].mxu0
    %v1790 = vpop.f32.mrb[0].mxu0
    %1791 = vdwg.mxu0
    %vm1792 = vcmask 80896
    %1793 = vst.msk [vmem:[#allocation8] sm:$0xff] %vm1792, %v1787
    // Predicated region
    $region50: #{rnn_forward.1} parent=1 // pred_check
      _
    $region51: #{rnn_forward.1} parent=1 // pred_check_branch
      %1795 = sbr.rel (0) target = $region53
    $region52: #{rnn_forward.1} parent=1 // pred_region
      %s1797 = ssub.s32 128, 128
      %1798 = vsyncadd [#allocation4], %s1797
      %s1800 = sshll.u32 [#allocation8], 4
      %s1801 = int_to_ptr.vmem [resolvable:$true] %s1800
      %1803 = dma.vmem_to_hbm [thread:$0]  %s1801, 128, %s9, [#allocation4]
    $region53: #{rnn_forward.1} parent=1 // pred_fallthru
      _
    // Predicated region
    $region54: #{rnn_forward.1} parent=1 // pred_check
      _
    $region55: #{rnn_forward.1} parent=1 // pred_check_branch
      %1805 = sbr.rel (0) target = $region57
    $region56: #{rnn_forward.1} parent=1 // pred_region
      %1806 = dma.done [#allocation4], 128
    $region57: #{rnn_forward.1} parent=1 // pred_fallthru
      _
    %1807 = vsyncpa [#allocation3], 1
    %1808 = vsyncpa [#allocation6], 1
    %1809 = vsyncpa [#allocation4], 1

</llo_original>
